<compile_context>
chip_gen: v7x
topology: tpu7x:2x2x1
jax: 0.10.0
libtpu: 0.0.40
codegen_flags: <defaults>
</compile_context>

<pallas_src>
import jax
import jax.numpy as jnp
from jax import lax
from jax.experimental import pallas as pl
from jax.experimental.pallas import tpu as pltpu

ENCODER_DIM = 256          # config.encoder_dim (shrunk for the demo)
KERNEL_SIZE = 5            # config.convolution_kernel_size
LN_EPS = 1e-6              # LayerNorm epsilon
BN_EPS = 1e-3              # config.batch_norm_epsilon


# ---------------------------------------------------------------------------
# Kernel 1: LayerNorm -> fused GLU -> pad mask -> depthwise conv
#           + per-block centered BatchNorm partials (sum, M2)
# ---------------------------------------------------------------------------
def _part1_kernel(lens_ref, x_ref, ln_s_ref, ln_b_ref, w12_ref, b12_ref, cw_ref,
                  y_ref, stats_ref):
    Bb, T, D = y_ref.shape
    R = Bb * T
    P = (KERNEL_SIZE - 1) // 2
    i0 = pl.program_id(0) * Bb

    # --- valid-frame mask from per-item lengths (SMEM scalars) ---
    lens = [lens_ref[i0 + i] for i in range(Bb)]
    len_col = jnp.stack(lens).reshape(Bb, 1, 1)
    t_iota = lax.broadcasted_iota(jnp.int32, (Bb, T, 1), 1)
    mask3 = (t_iota < len_col).astype(jnp.float32)            # (Bb, T, 1), 1.0 = valid
    mask_r = mask3.reshape(R, 1)

    x = x_ref[...].reshape(R, D)

    # --- LayerNorm (scale = 1 + gamma, pre-added on host) ---
    mu = jnp.mean(x, axis=-1, keepdims=True)
    var = jnp.mean(jnp.square(x - mu), axis=-1, keepdims=True)
    xn = (x - mu) * lax.rsqrt(var + LN_EPS)
    xn = xn * ln_s_ref[...] + ln_b_ref[...]

    # --- GLU: one fused (R, D) x (D, 2D) bf16 matmul, f32 accumulation ---
    ag = jnp.dot(xn.astype(jnp.bfloat16), w12_ref[...],
                 preferred_element_type=jnp.float32) + b12_ref[...]
    h = (ag[:, :D] * jax.nn.sigmoid(ag[:, D:])) * mask_r       # (R, D)

    # --- depthwise Conv1d, kernel K, stride 1, 'same', no bias -------------
    # Per-item time padding: taps are simple static slices, no validity masks,
    # taps never leak across batch items.
    h3 = h.reshape(Bb, T, D)
    zp = jnp.zeros((Bb, P, D), dtype=h3.dtype)
    hp = jnp.concatenate([zp, h3, zp], axis=1)                 # (Bb, T+2P, D)
    cw = cw_ref[...]                                           # (K, D)
    y = cw[0:1, :] * hp[:, 0:T, :]
    for k in range(1, KERNEL_SIZE):
        y = y + cw[k:k + 1, :] * hp[:, k:k + T, :]             # (Bb, T, D)

    yb = y.astype(jnp.bfloat16)
    y_ref[...] = yb                                            # bf16 HBM round trip

    # --- per-block centered BatchNorm partials (sum, M2 about block mean) ---
    n = lens[0]
    for i in range(1, Bb):
        n = n + lens[i]
    n_f = jnp.maximum(n.astype(jnp.float32), 1.0)
    yq = yb.astype(jnp.float32).reshape(R, D)                  # what pass 2 sees
    masked = yq * mask_r
    s1 = jnp.sum(masked, axis=0, keepdims=True)                # (1, D)
    mean_blk = s1 / n_f
    dev = (yq - mean_blk) * mask_r
    m2 = jnp.sum(dev * dev, axis=0, keepdims=True)             # (1, D)
    stats_ref[...] = jnp.concatenate([s1, m2], axis=0).reshape(1, 2, D)  # one store


# ---------------------------------------------------------------------------
# Kernel 2: BatchNorm (affine folded into mul/add on host glue) -> pad mask ->
#           SiLU -> lin3
# ---------------------------------------------------------------------------
def _part2_kernel(lens_ref, y_ref, bn_mul_ref, bn_add_ref, w3_ref, b3_ref, o_ref):
    Bb, T, D = o_ref.shape
    R = Bb * T
    i0 = pl.program_id(0) * Bb

    lens = [lens_ref[i0 + i] for i in range(Bb)]
    len_col = jnp.stack(lens).reshape(Bb, 1, 1)
    t_iota = lax.broadcasted_iota(jnp.int32, (Bb, T, 1), 1)
    mask_r = (t_iota < len_col).astype(jnp.float32).reshape(R, 1)

    y = y_ref[...].astype(jnp.float32).reshape(R, D)
    bn = (y * bn_mul_ref[...] + bn_add_ref[...]) * mask_r      # masked_fill(mask==0, 0)
    s = bn * jax.nn.sigmoid(bn)                                # SiLU

    o = jnp.dot(s.astype(jnp.bfloat16), w3_ref[...],
                preferred_element_type=jnp.float32) + b3_ref[...]
    o_ref[...] = o.reshape(Bb, T, D)
    # dropout p = 0.0 (conv_residual_dropout_rate) -> identity


# ---------------------------------------------------------------------------
# Wrapper
# ---------------------------------------------------------------------------
def _vmem_limit_bytes():
    kind = ""
    try:
        kind = jax.devices()[0].device_kind.lower()
    except Exception:
        pass
    if "v5" in kind or "v6" in kind:
        return 64 * 1024 * 1024        # 128 MiB physical VMEM per core
    return 48 * 1024 * 1024            # v7x has 64 MiB per core; safe default


def _pick_batch_block(B, T, D, vmem_limit):
    """Largest divisor bb of B such that bb*T rows fit the per-step VMEM working
    set (targeting ~1-2k rows) and, when B >= 2, at least two grid steps remain
    (v7x has 2 TensorCores; >=2 steps also restores prefetch/writeback overlap)."""
    # per flattened row: x in (f32, 2 bufs) + y out (bf16, 2 bufs) + ~10 live f32 temps
    bytes_per_row = (2 * 4 + 2 * 2 + 10 * 4) * D
    weight_bytes = 2 * 2 * (2 * D * D + D * D + 8 * D)   # bf16 weights, double-buffered
    avail = max(vmem_limit // 2 - weight_bytes, bytes_per_row * T)
    target_rows = max(T, min(avail // bytes_per_row, 2048))
    best = 1
    for d in range(1, B + 1):
        if B % d:
            continue
        if d * T > target_rows:
            continue
        if B >= 2 and B // d < 2:      # keep nb >= 2 whenever possible
            continue
        best = max(best, d)
    return best


def conv_block_forward(x, paddings, params):
    B, T, D = x.shape
    vmem_limit = _vmem_limit_bytes()
    bb = _pick_batch_block(B, T, D, vmem_limit)
    nb = B // bb

    # TODO(synk): padding masks are assumed to be right-padding (librispeech), i.e.
    # fully described by a per-item length; arbitrary hole patterns are unsupported.
    lengths = jnp.round(jnp.sum(1.0 - paddings, axis=1)).astype(jnp.int32)   # (B,)

    row = lambda v: v.reshape(1, -1).astype(jnp.float32)
    # Parameter packing (constant-folded under jit): lin1/lin2 fused into one
    # (D, 2D) bf16 weight; LayerNorm/BatchNorm scales pre-add the +1.
    w12 = jnp.concatenate([params["w1"], params["w2"]], axis=1).astype(jnp.bfloat16)
    b12 = jnp.concatenate([params["b1"], params["b2"]], axis=0).reshape(1, 2 * D).astype(jnp.float32)
    w3 = params["w3"].astype(jnp.bfloat16)
    b3 = row(params["b3"])
    ln_s = row(1.0 + params["ln_scale"])
    ln_b = row(params["ln_bias"])
    cw = params["conv_w_kd"].astype(jnp.float32)               # (K, D)

    cidx = lambda b, lens: (0, 0)
    act_idx = lambda b, lens: (b, 0, 0)
    act_spec = pl.BlockSpec((bb, T, D), act_idx)
    stats_spec = pl.BlockSpec((1, 2, D), act_idx)
    c1d = pl.BlockSpec((1, D), cidx)
    # NOTE: on v7x, pipeline_mode=pl.Buffered(1) on the constant-index weight specs
    # would drop their second VMEM buffer; omitted here for portability.
    cparams = pltpu.CompilerParams(dimension_semantics=("parallel",),
                                   vmem_limit_bytes=vmem_limit)

    # Pass 1: LN -> fused GLU -> mask -> depthwise conv, + centered BN partials.
    ce1 = pl.CostEstimate(
        flops=2 * B * T * D * (2 * D) + 2 * KERNEL_SIZE * B * T * D + 12 * B * T * D,
        transcendentals=B * T * D + B * T,
        bytes_accessed=B * T * D * 4 + B * T * D * 2 + 2 * D * D * 2 + nb * 2 * D * 4)
    y, stats = pl.pallas_call(
        _part1_kernel,
        out_shape=(jax.ShapeDtypeStruct((B, T, D), jnp.bfloat16),
                   jax.ShapeDtypeStruct((nb, 2, D), jnp.float32)),
        grid_spec=pltpu.PrefetchScalarGridSpec(
            num_scalar_prefetch=1,
            grid=(nb,),
            in_specs=[act_spec, c1d, c1d,
                      pl.BlockSpec((D, 2 * D), cidx),
                      pl.BlockSpec((1, 2 * D), cidx),
                      pl.BlockSpec((KERNEL_SIZE, D), cidx)],
            out_specs=(act_spec, stats_spec)),
        compiler_params=cparams,
        cost_estimate=ce1,
    )(lengths, x, ln_s, ln_b, w12, b12, cw)

    # Tiny glue: combine per-block centered partials (parallel-variance / Chan) and
    # fold the BatchNorm affine into one (mul, add) pair.
    lens_f = lengths.astype(jnp.float32)
    n_blk = jnp.sum(lens_f.reshape(nb, bb), axis=1)            # (nb,)
    count = jnp.maximum(jnp.sum(n_blk), 1.0)
    s_blk = stats[:, 0, :]                                     # (nb, D)
    m2_blk = stats[:, 1, :]                                    # (nb, D)
    mean_blk = s_blk / jnp.maximum(n_blk, 1.0)[:, None]
    mean = jnp.sum(s_blk, axis=0) / count                      # (D,)
    m2 = jnp.sum(m2_blk, axis=0) + jnp.sum(
        n_blk[:, None] * jnp.square(mean_blk - mean[None, :]), axis=0)
    var = m2 / count
    v = (1.0 + params["bn_scale"]) * lax.rsqrt(var + BN_EPS)
    bn_mul = v.reshape(1, D).astype(jnp.float32)
    bn_add = (params["bn_bias"] - mean * v).reshape(1, D).astype(jnp.float32)
    # TODO(synk): running_mean / running_var buffer updates are in-place training
    # state side effects; they do not affect the forward output and are omitted.

    # Pass 2: BatchNorm (folded affine) -> mask -> SiLU -> lin3.
    # TODO(synk): fully fusing pass 1/2 (y resident in VMEM) is only valid when one
    # block covers the whole batch and fits the per-generation VMEM budget; kept as
    # two calls here.
    ce2 = pl.CostEstimate(
        flops=2 * B * T * D * D + 8 * B * T * D,
        transcendentals=B * T * D,
        bytes_accessed=B * T * D * 2 + B * T * D * 4 + D * D * 2)
    out = pl.pallas_call(
        _part2_kernel,
        out_shape=jax.ShapeDtypeStruct((B, T, D), jnp.float32),
        grid_spec=pltpu.PrefetchScalarGridSpec(
            num_scalar_prefetch=1,
            grid=(nb,),
            in_specs=[act_spec, c1d, c1d,
                      pl.BlockSpec((D, D), cidx), c1d],
            out_specs=act_spec),
        compiler_params=cparams,
        cost_estimate=ce2,
    )(lengths, y, bn_mul, bn_add, w3, b3)
    return out


# ---------------------------------------------------------------------------
# Pure-JAX reference (same training-mode semantics, f32 HIGHEST precision)
# ---------------------------------------------------------------------------
def reference_forward(x, paddings, params):
    D = x.shape[-1]
    hi = lax.Precision.HIGHEST
    mask3 = (1.0 - paddings)[:, :, None]
    mu = jnp.mean(x, -1, keepdims=True)
    var = jnp.mean(jnp.square(x - mu), -1, keepdims=True)
    xn = (x - mu) / jnp.sqrt(var + LN_EPS) * (1.0 + params["ln_scale"]) + params["ln_bias"]
    a = jnp.dot(xn, params["w1"], precision=hi) + params["b1"]
    g = jnp.dot(xn, params["w2"], precision=hi) + params["b2"]
    h = (a * jax.nn.sigmoid(g)) * mask3
    x_ncw = jnp.transpose(h, (0, 2, 1))
    y = lax.conv_general_dilated(
        x_ncw, params["conv_w_oik"], window_strides=(1,), padding="SAME",
        feature_group_count=D, dimension_numbers=("NCH", "OIH", "NCH"), precision=hi)
    y = jnp.transpose(y, (0, 2, 1))
    count = jnp.sum(1.0 - paddings)
    masked = y * mask3
    mean = jnp.sum(masked, axis=(0, 1)) / count
    varr = jnp.sum(jnp.square(masked - mean) * mask3, axis=(0, 1)) / count
    v = (1.0 + params["bn_scale"]) * lax.rsqrt(varr + BN_EPS)
    bn = ((y - mean) * v + params["bn_bias"]) * mask3
    s = bn * jax.nn.sigmoid(bn)
    return jnp.dot(s, params["w3"], precision=hi) + params["b3"]


def init_params(key, D, K):
    ks = jax.random.split(key, 11)
    std = 1.0 / jnp.sqrt(D)
    p = {
        "ln_scale": 0.1 * jax.random.normal(ks[0], (D,), jnp.float32),
        "ln_bias": 0.1 * jax.random.normal(ks[1], (D,), jnp.float32),
        "w1": std * jax.random.normal(ks[2], (D, D), jnp.float32),   # (in, out)
        "b1": 0.1 * jax.random.normal(ks[3], (D,), jnp.float32),
        "w2": std * jax.random.normal(ks[4], (D, D), jnp.float32),
        "b2": 0.1 * jax.random.normal(ks[5], (D,), jnp.float32),
        "conv_w_oik": 0.5 * jax.random.normal(ks[6], (D, 1, K), jnp.float32),  # torch layout
        "bn_scale": 0.1 * jax.random.normal(ks[7], (D,), jnp.float32),
        "bn_bias": 0.1 * jax.random.normal(ks[8], (D,), jnp.float32),
        "w3": std * jax.random.normal(ks[9], (D, D), jnp.float32),
        "b3": 0.1 * jax.random.normal(ks[10], (D,), jnp.float32),
    }
    p["conv_w_kd"] = jnp.transpose(p["conv_w_oik"][:, 0, :], (1, 0))  # (K, D)
    return p


if __name__ == "__main__":
    B, T, D, K = 2, 16, ENCODER_DIM, KERNEL_SIZE
    key = jax.random.PRNGKey(0)
    kx, kp = jax.random.split(key)

    x = jax.random.normal(kx, (B, T, D), jnp.float32)
    lengths = jnp.array([T, 11], jnp.int32)
    t_idx = jnp.arange(T)[None, :]
    paddings = (t_idx >= lengths[:, None]).astype(jnp.float32)   # (B, T), 1.0 = padded

    params = init_params(kp, D, K)

    out = jax.jit(conv_block_forward)(x, paddings, params)
    out = jax.block_until_ready(out)

    ref = reference_forward(x, paddings, params)
    # Per-element mixed abs/rel tolerance (bf16 matmul operands + bf16 y round trip).
    err = jnp.abs(out - ref)
    tol = 3e-2 + 3e-2 * jnp.abs(ref)
    assert bool(jnp.all(err <= tol)), f"max abs error vs reference: {float(jnp.max(err))}"
    print("KERNEL_OK")
</pallas_src>

<mosaic_0001>
module attributes {stable_mosaic.version = 11 : i64} {
  func.func @_part1_kernel(%arg0: i32, %arg1: memref<2xi32, #tpu.memory_space<smem>>, %arg2: memref<1x16x256xf32, #tpu.memory_space<vmem>>, %arg3: memref<1x256xf32, #tpu.memory_space<vmem>>, %arg4: memref<1x256xf32, #tpu.memory_space<vmem>>, %arg5: memref<256x512xbf16, #tpu.memory_space<vmem>>, %arg6: memref<1x512xf32, #tpu.memory_space<vmem>>, %arg7: memref<5x256xf32, #tpu.memory_space<vmem>>, %arg8: memref<1x16x256xbf16, #tpu.memory_space<vmem>>, %arg9: memref<1x2x256xf32, #tpu.memory_space<vmem>>) attributes {dimension_semantics = [#tpu.dimension_semantics<parallel>], iteration_bounds = array<i64: 2>, scalar_prefetch = 1 : i64, scratch_operands = 0 : i64, tpu.core_type = #tpu.core_type<tc>, window_params = [{transform_indices = @transform_0, window_bounds = array<i64: 1, 16, 256>}, {pipeline_mode = #tpu.pipeline_mode<synchronous>, transform_indices = @transform_1, window_bounds = array<i64: 1, 256>}, {pipeline_mode = #tpu.pipeline_mode<synchronous>, transform_indices = @transform_2, window_bounds = array<i64: 1, 256>}, {pipeline_mode = #tpu.pipeline_mode<synchronous>, transform_indices = @transform_3, window_bounds = array<i64: 256, 512>}, {pipeline_mode = #tpu.pipeline_mode<synchronous>, transform_indices = @transform_4, window_bounds = array<i64: 1, 512>}, {pipeline_mode = #tpu.pipeline_mode<synchronous>, transform_indices = @transform_5, window_bounds = array<i64: 5, 256>}, {transform_indices = @transform_6, window_bounds = array<i64: 1, 16, 256>}, {transform_indices = @transform_7, window_bounds = array<i64: 1, 2, 256>}]} {
    %c1_i32 = arith.constant 1 : i32
    %0 = arith.muli %arg0, %c1_i32 : i32
    %c0_i32 = arith.constant 0 : i32
    %1 = arith.addi %0, %c0_i32 : i32
    %2 = arith.index_cast %1 : i32 to index
    %3 = memref.load %arg1[%2] : memref<2xi32, #tpu.memory_space<smem>>
    %4 = vector.broadcast %3 : i32 to vector<1xi32>
    %5 = vector.shape_cast %4 : vector<1xi32> to vector<1x1x1xi32>
    %6 = tpu.iota {dimensions = array<i32: 1>} : vector<1x16x1xi32>
    %7 = vector.broadcast %5 : vector<1x1x1xi32> to vector<1x16x1xi32>
    %8 = arith.cmpi slt, %6, %7 : vector<1x16x1xi32>
    %9 = arith.extui %8 : vector<1x16x1xi1> to vector<1x16x1xi32>
    %10 = arith.sitofp %9 : vector<1x16x1xi32> to vector<1x16x1xf32>
    %11 = vector.shape_cast %10 : vector<1x16x1xf32> to vector<16x1xf32>
    %c0 = arith.constant 0 : index
    %c0_0 = arith.constant 0 : index
    %c0_1 = arith.constant 0 : index
    %12 = vector.load %arg2[%c0, %c0_0, %c0_1] : memref<1x16x256xf32, #tpu.memory_space<vmem>>, vector<1x16x256xf32>
    %13 = vector.shape_cast %12 : vector<1x16x256xf32> to vector<16x256xf32>
    %cst = arith.constant dense<0.000000e+00> : vector<16xf32>
    %14 = vector.multi_reduction <add>, %13, %cst [1] : vector<16x256xf32> to vector<16xf32>
    %15 = vector.shape_cast %14 : vector<16xf32> to vector<16x1xf32>
    %cst_2 = arith.constant 2.560000e+02 : f32
    %16 = vector.broadcast %cst_2 : f32 to vector<16x1xf32>
    %17 = arith.divf %15, %16 : vector<16x1xf32>
    %18 = vector.broadcast %17 : vector<16x1xf32> to vector<16x256xf32>
    %19 = arith.subf %13, %18 : vector<16x256xf32>
    %20 = arith.mulf %19, %19 : vector<16x256xf32>
    %cst_3 = arith.constant dense<0.000000e+00> : vector<16xf32>
    %21 = vector.multi_reduction <add>, %20, %cst_3 [1] : vector<16x256xf32> to vector<16xf32>
    %22 = vector.shape_cast %21 : vector<16xf32> to vector<16x1xf32>
    %cst_4 = arith.constant 2.560000e+02 : f32
    %23 = vector.broadcast %cst_4 : f32 to vector<16x1xf32>
    %24 = arith.divf %22, %23 : vector<16x1xf32>
    %25 = vector.broadcast %17 : vector<16x1xf32> to vector<16x256xf32>
    %26 = arith.subf %13, %25 : vector<16x256xf32>
    %cst_5 = arith.constant 9.99999997E-7 : f32
    %27 = vector.broadcast %cst_5 : f32 to vector<16x1xf32>
    %28 = arith.addf %24, %27 : vector<16x1xf32>
    %29 = math.rsqrt %28 : vector<16x1xf32>
    %30 = vector.broadcast %29 : vector<16x1xf32> to vector<16x256xf32>
    %31 = arith.mulf %26, %30 : vector<16x256xf32>
    %c0_6 = arith.constant 0 : index
    %c0_7 = arith.constant 0 : index
    %32 = vector.load %arg3[%c0_6, %c0_7] : memref<1x256xf32, #tpu.memory_space<vmem>>, vector<1x256xf32>
    %33 = vector.broadcast %32 : vector<1x256xf32> to vector<16x256xf32>
    %34 = arith.mulf %31, %33 : vector<16x256xf32>
    %c0_8 = arith.constant 0 : index
    %c0_9 = arith.constant 0 : index
    %35 = vector.load %arg4[%c0_8, %c0_9] : memref<1x256xf32, #tpu.memory_space<vmem>>, vector<1x256xf32>
    %36 = vector.broadcast %35 : vector<1x256xf32> to vector<16x256xf32>
    %37 = arith.addf %34, %36 : vector<16x256xf32>
    %38 = arith.truncf %37 : vector<16x256xf32> to vector<16x256xbf16>
    %c0_10 = arith.constant 0 : index
    %c0_11 = arith.constant 0 : index
    %39 = vector.load %arg5[%c0_10, %c0_11] : memref<256x512xbf16, #tpu.memory_space<vmem>>, vector<256x512xbf16>
    %cst_12 = arith.constant dense<0.000000e+00> : vector<16x512xf32>
    %40 = tpu.matmul %38, %39, %cst_12 {dimension_numbers = #tpu.dot_dimension_numbers<[1], [0], [0], [1], [0, 0, 1, 1], [], []>} : vector<16x256xbf16>, vector<256x512xbf16>, vector<16x512xf32> -> vector<16x512xf32>
    %c0_13 = arith.constant 0 : index
    %c0_14 = arith.constant 0 : index
    %41 = vector.load %arg6[%c0_13, %c0_14] : memref<1x512xf32, #tpu.memory_space<vmem>>, vector<1x512xf32>
    %42 = vector.broadcast %41 : vector<1x512xf32> to vector<16x512xf32>
    %43 = arith.addf %40, %42 : vector<16x512xf32>
    %44 = vector.extract_strided_slice %43 {offsets = [0, 0], sizes = [16, 256], strides = [1, 1]} : vector<16x512xf32> to vector<16x256xf32>
    %45 = vector.extract_strided_slice %43 {offsets = [0, 256], sizes = [16, 256], strides = [1, 1]} : vector<16x512xf32> to vector<16x256xf32>
    %46 = arith.negf %45 : vector<16x256xf32>
    %47 = math.exp %46 : vector<16x256xf32>
    %cst_15 = arith.constant 1.000000e+00 : f32
    %48 = vector.broadcast %cst_15 : f32 to vector<16x256xf32>
    %49 = arith.addf %48, %47 : vector<16x256xf32>
    %50 = arith.divf %48, %49 : vector<16x256xf32>
    %51 = arith.mulf %44, %50 : vector<16x256xf32>
    %52 = vector.broadcast %11 : vector<16x1xf32> to vector<16x256xf32>
    %53 = arith.mulf %51, %52 : vector<16x256xf32>
    %54 = vector.shape_cast %53 : vector<16x256xf32> to vector<1x16x256xf32>
    %cst_16 = arith.constant 0.000000e+00 : f32
    %55 = vector.broadcast %cst_16 : f32 to vector<1x2x256xf32>
    %56 = tpu.concatenate %55, %54, %55 in 1 : vector<1x2x256xf32>, vector<1x16x256xf32>, vector<1x2x256xf32> -> vector<1x20x256xf32>
    %c0_17 = arith.constant 0 : index
    %c0_18 = arith.constant 0 : index
    %57 = vector.load %arg7[%c0_17, %c0_18] : memref<5x256xf32, #tpu.memory_space<vmem>>, vector<5x256xf32>
    %58 = vector.extract_strided_slice %57 {offsets = [0, 0], sizes = [1, 256], strides = [1, 1]} : vector<5x256xf32> to vector<1x256xf32>
    %59 = vector.extract_strided_slice %56 {offsets = [0, 0, 0], sizes = [1, 16, 256], strides = [1, 1, 1]} : vector<1x20x256xf32> to vector<1x16x256xf32>
    %60 = vector.shape_cast %58 : vector<1x256xf32> to vector<1x1x256xf32>
    %61 = vector.broadcast %60 : vector<1x1x256xf32> to vector<1x16x256xf32>
    %62 = arith.mulf %61, %59 : vector<1x16x256xf32>
    %63 = vector.extract_strided_slice %57 {offsets = [1, 0], sizes = [1, 256], strides = [1, 1]} : vector<5x256xf32> to vector<1x256xf32>
    %64 = vector.extract_strided_slice %56 {offsets = [0, 1, 0], sizes = [1, 16, 256], strides = [1, 1, 1]} : vector<1x20x256xf32> to vector<1x16x256xf32>
    %65 = vector.shape_cast %63 : vector<1x256xf32> to vector<1x1x256xf32>
    %66 = vector.broadcast %65 : vector<1x1x256xf32> to vector<1x16x256xf32>
    %67 = arith.mulf %66, %64 : vector<1x16x256xf32>
    %68 = arith.addf %62, %67 : vector<1x16x256xf32>
    %69 = vector.extract_strided_slice %57 {offsets = [2, 0], sizes = [1, 256], strides = [1, 1]} : vector<5x256xf32> to vector<1x256xf32>
    %70 = vector.extract_strided_slice %56 {offsets = [0, 2, 0], sizes = [1, 16, 256], strides = [1, 1, 1]} : vector<1x20x256xf32> to vector<1x16x256xf32>
    %71 = vector.shape_cast %69 : vector<1x256xf32> to vector<1x1x256xf32>
    %72 = vector.broadcast %71 : vector<1x1x256xf32> to vector<1x16x256xf32>
    %73 = arith.mulf %72, %70 : vector<1x16x256xf32>
    %74 = arith.addf %68, %73 : vector<1x16x256xf32>
    %75 = vector.extract_strided_slice %57 {offsets = [3, 0], sizes = [1, 256], strides = [1, 1]} : vector<5x256xf32> to vector<1x256xf32>
    %76 = vector.extract_strided_slice %56 {offsets = [0, 3, 0], sizes = [1, 16, 256], strides = [1, 1, 1]} : vector<1x20x256xf32> to vector<1x16x256xf32>
    %77 = vector.shape_cast %75 : vector<1x256xf32> to vector<1x1x256xf32>
    %78 = vector.broadcast %77 : vector<1x1x256xf32> to vector<1x16x256xf32>
    %79 = arith.mulf %78, %76 : vector<1x16x256xf32>
    %80 = arith.addf %74, %79 : vector<1x16x256xf32>
    %81 = vector.extract_strided_slice %57 {offsets = [4, 0], sizes = [1, 256], strides = [1, 1]} : vector<5x256xf32> to vector<1x256xf32>
    %82 = vector.extract_strided_slice %56 {offsets = [0, 4, 0], sizes = [1, 16, 256], strides = [1, 1, 1]} : vector<1x20x256xf32> to vector<1x16x256xf32>
    %83 = vector.shape_cast %81 : vector<1x256xf32> to vector<1x1x256xf32>
    %84 = vector.broadcast %83 : vector<1x1x256xf32> to vector<1x16x256xf32>
    %85 = arith.mulf %84, %82 : vector<1x16x256xf32>
    %86 = arith.addf %80, %85 : vector<1x16x256xf32>
    %87 = arith.truncf %86 : vector<1x16x256xf32> to vector<1x16x256xbf16>
    %c0_19 = arith.constant 0 : index
    %c0_20 = arith.constant 0 : index
    %c0_21 = arith.constant 0 : index
    %88 = vector.load %arg8[%c0_19, %c0_20, %c0_21] : memref<1x16x256xbf16, #tpu.memory_space<vmem>>, vector<1x16x256xbf16>
    tpu.vector_store %arg8[%c0_19, %c0_20, %c0_21], %87 {strides = array<i32>} : memref<1x16x256xbf16, #tpu.memory_space<vmem>>, vector<1x16x256xbf16>,
    %89 = arith.sitofp %3 : i32 to f32
    %cst_22 = arith.constant 1.000000e+00 : f32
    %90 = arith.maximumf %89, %cst_22 : f32
    %91 = arith.extf %87 : vector<1x16x256xbf16> to vector<1x16x256xf32>
    %92 = vector.shape_cast %91 : vector<1x16x256xf32> to vector<16x256xf32>
    %93 = vector.broadcast %11 : vector<16x1xf32> to vector<16x256xf32>
    %94 = arith.mulf %92, %93 : vector<16x256xf32>
    %cst_23 = arith.constant dense<0.000000e+00> : vector<256xf32>
    %95 = vector.multi_reduction <add>, %94, %cst_23 [0] : vector<16x256xf32> to vector<256xf32>
    %96 = vector.shape_cast %95 : vector<256xf32> to vector<1x256xf32>
    %97 = vector.broadcast %90 : f32 to vector<1x256xf32>
    %98 = arith.divf %96, %97 : vector<1x256xf32>
    %99 = vector.broadcast %98 : vector<1x256xf32> to vector<16x256xf32>
    %100 = arith.subf %92, %99 : vector<16x256xf32>
    %101 = vector.broadcast %11 : vector<16x1xf32> to vector<16x256xf32>
    %102 = arith.mulf %100, %101 : vector<16x256xf32>
    %103 = arith.mulf %102, %102 : vector<16x256xf32>
    %cst_24 = arith.constant dense<0.000000e+00> : vector<256xf32>
    %104 = vector.multi_reduction <add>, %103, %cst_24 [0] : vector<16x256xf32> to vector<256xf32>
    %105 = vector.shape_cast %104 : vector<256xf32> to vector<1x256xf32>
    %106 = tpu.concatenate %96, %105 in 0 : vector<1x256xf32>, vector<1x256xf32> -> vector<2x256xf32>
    %107 = vector.shape_cast %106 : vector<2x256xf32> to vector<1x2x256xf32>
    %c0_25 = arith.constant 0 : index
    %c0_26 = arith.constant 0 : index
    %c0_27 = arith.constant 0 : index
    %108 = vector.load %arg9[%c0_25, %c0_26, %c0_27] : memref<1x2x256xf32, #tpu.memory_space<vmem>>, vector<1x2x256xf32>
    tpu.vector_store %arg9[%c0_25, %c0_26, %c0_27], %107 {strides = array<i32>} : memref<1x2x256xf32, #tpu.memory_space<vmem>>, vector<1x2x256xf32>,
    return
  }
  func.func @transform_0(%arg0: i32, %arg1: memref<2xi32, #tpu.memory_space<smem>>) -> (i32, i32, i32) {
    %c0_i32 = arith.constant 0 : i32
    %c0_i32_0 = arith.constant 0 : i32
    %c0_i32_1 = arith.constant 0 : i32
    return %arg0, %c0_i32, %c0_i32_0 : i32, i32, i32
  }
  func.func @transform_1(%arg0: i32, %arg1: memref<2xi32, #tpu.memory_space<smem>>) -> (i32, i32) {
    %c0_i32 = arith.constant 0 : i32
    %c0_i32_0 = arith.constant 0 : i32
    %c0_i32_1 = arith.constant 0 : i32
    return %c0_i32, %c0_i32_0 : i32, i32
  }
  func.func @transform_2(%arg0: i32, %arg1: memref<2xi32, #tpu.memory_space<smem>>) -> (i32, i32) {
    %c0_i32 = arith.constant 0 : i32
    %c0_i32_0 = arith.constant 0 : i32
    %c0_i32_1 = arith.constant 0 : i32
    return %c0_i32, %c0_i32_0 : i32, i32
  }
  func.func @transform_3(%arg0: i32, %arg1: memref<2xi32, #tpu.memory_space<smem>>) -> (i32, i32) {
    %c0_i32 = arith.constant 0 : i32
    %c0_i32_0 = arith.constant 0 : i32
    %c0_i32_1 = arith.constant 0 : i32
    return %c0_i32, %c0_i32_0 : i32, i32
  }
  func.func @transform_4(%arg0: i32, %arg1: memref<2xi32, #tpu.memory_space<smem>>) -> (i32, i32) {
    %c0_i32 = arith.constant 0 : i32
    %c0_i32_0 = arith.constant 0 : i32
    %c0_i32_1 = arith.constant 0 : i32
    return %c0_i32, %c0_i32_0 : i32, i32
  }
  func.func @transform_5(%arg0: i32, %arg1: memref<2xi32, #tpu.memory_space<smem>>) -> (i32, i32) {
    %c0_i32 = arith.constant 0 : i32
    %c0_i32_0 = arith.constant 0 : i32
    %c0_i32_1 = arith.constant 0 : i32
    return %c0_i32, %c0_i32_0 : i32, i32
  }
  func.func @transform_6(%arg0: i32, %arg1: memref<2xi32, #tpu.memory_space<smem>>) -> (i32, i32, i32) {
    %c0_i32 = arith.constant 0 : i32
    %c0_i32_0 = arith.constant 0 : i32
    %c0_i32_1 = arith.constant 0 : i32
    return %arg0, %c0_i32, %c0_i32_0 : i32, i32, i32
  }
  func.func @transform_7(%arg0: i32, %arg1: memref<2xi32, #tpu.memory_space<smem>>) -> (i32, i32, i32) {
    %c0_i32 = arith.constant 0 : i32
    %c0_i32_0 = arith.constant 0 : i32
    %c0_i32_1 = arith.constant 0 : i32
    return %arg0, %c0_i32, %c0_i32_0 : i32, i32, i32
  }
}

module attributes {stable_mosaic.version = 11 : i64} {
  func.func @_part2_kernel(%arg0: i32, %arg1: memref<2xi32, #tpu.memory_space<smem>>, %arg2: memref<1x16x256xbf16, #tpu.memory_space<vmem>>, %arg3: memref<1x256xf32, #tpu.memory_space<vmem>>, %arg4: memref<1x256xf32, #tpu.memory_space<vmem>>, %arg5: memref<256x256xbf16, #tpu.memory_space<vmem>>, %arg6: memref<1x256xf32, #tpu.memory_space<vmem>>, %arg7: memref<1x16x256xf32, #tpu.memory_space<vmem>>) attributes {dimension_semantics = [#tpu.dimension_semantics<parallel>], iteration_bounds = array<i64: 2>, scalar_prefetch = 1 : i64, scratch_operands = 0 : i64, tpu.core_type = #tpu.core_type<tc>, window_params = [{transform_indices = @transform_0, window_bounds = array<i64: 1, 16, 256>}, {pipeline_mode = #tpu.pipeline_mode<synchronous>, transform_indices = @transform_1, window_bounds = array<i64: 1, 256>}, {pipeline_mode = #tpu.pipeline_mode<synchronous>, transform_indices = @transform_2, window_bounds = array<i64: 1, 256>}, {pipeline_mode = #tpu.pipeline_mode<synchronous>, transform_indices = @transform_3, window_bounds = array<i64: 256, 256>}, {pipeline_mode = #tpu.pipeline_mode<synchronous>, transform_indices = @transform_4, window_bounds = array<i64: 1, 256>}, {transform_indices = @transform_5, window_bounds = array<i64: 1, 16, 256>}]} {
    %c1_i32 = arith.constant 1 : i32
    %0 = arith.muli %arg0, %c1_i32 : i32
    %c0_i32 = arith.constant 0 : i32
    %1 = arith.addi %0, %c0_i32 : i32
    %2 = arith.index_cast %1 : i32 to index
    %3 = memref.load %arg1[%2] : memref<2xi32, #tpu.memory_space<smem>>
    %4 = vector.broadcast %3 : i32 to vector<1xi32>
    %5 = vector.shape_cast %4 : vector<1xi32> to vector<1x1x1xi32>
    %6 = tpu.iota {dimensions = array<i32: 1>} : vector<1x16x1xi32>
    %7 = vector.broadcast %5 : vector<1x1x1xi32> to vector<1x16x1xi32>
    %8 = arith.cmpi slt, %6, %7 : vector<1x16x1xi32>
    %9 = arith.extui %8 : vector<1x16x1xi1> to vector<1x16x1xi32>
    %10 = arith.sitofp %9 : vector<1x16x1xi32> to vector<1x16x1xf32>
    %11 = vector.shape_cast %10 : vector<1x16x1xf32> to vector<16x1xf32>
    %c0 = arith.constant 0 : index
    %c0_0 = arith.constant 0 : index
    %c0_1 = arith.constant 0 : index
    %12 = vector.load %arg2[%c0, %c0_0, %c0_1] : memref<1x16x256xbf16, #tpu.memory_space<vmem>>, vector<1x16x256xbf16>
    %13 = arith.extf %12 : vector<1x16x256xbf16> to vector<1x16x256xf32>
    %14 = vector.shape_cast %13 : vector<1x16x256xf32> to vector<16x256xf32>
    %c0_2 = arith.constant 0 : index
    %c0_3 = arith.constant 0 : index
    %15 = vector.load %arg3[%c0_2, %c0_3] : memref<1x256xf32, #tpu.memory_space<vmem>>, vector<1x256xf32>
    %16 = vector.broadcast %15 : vector<1x256xf32> to vector<16x256xf32>
    %17 = arith.mulf %14, %16 : vector<16x256xf32>
    %c0_4 = arith.constant 0 : index
    %c0_5 = arith.constant 0 : index
    %18 = vector.load %arg4[%c0_4, %c0_5] : memref<1x256xf32, #tpu.memory_space<vmem>>, vector<1x256xf32>
    %19 = vector.broadcast %18 : vector<1x256xf32> to vector<16x256xf32>
    %20 = arith.addf %17, %19 : vector<16x256xf32>
    %21 = vector.broadcast %11 : vector<16x1xf32> to vector<16x256xf32>
    %22 = arith.mulf %20, %21 : vector<16x256xf32>
    %23 = arith.negf %22 : vector<16x256xf32>
    %24 = math.exp %23 : vector<16x256xf32>
    %cst = arith.constant 1.000000e+00 : f32
    %25 = vector.broadcast %cst : f32 to vector<16x256xf32>
    %26 = arith.addf %25, %24 : vector<16x256xf32>
    %27 = arith.divf %25, %26 : vector<16x256xf32>
    %28 = arith.mulf %22, %27 : vector<16x256xf32>
    %29 = arith.truncf %28 : vector<16x256xf32> to vector<16x256xbf16>
    %c0_6 = arith.constant 0 : index
    %c0_7 = arith.constant 0 : index
    %30 = vector.load %arg5[%c0_6, %c0_7] : memref<256x256xbf16, #tpu.memory_space<vmem>>, vector<256x256xbf16>
    %cst_8 = arith.constant dense<0.000000e+00> : vector<16x256xf32>
    %31 = tpu.matmul %29, %30, %cst_8 {dimension_numbers = #tpu.dot_dimension_numbers<[1], [0], [0], [1], [0, 0, 1, 1], [], []>} : vector<16x256xbf16>, vector<256x256xbf16>, vector<16x256xf32> -> vector<16x256xf32>
    %c0_9 = arith.constant 0 : index
    %c0_10 = arith.constant 0 : index
    %32 = vector.load %arg6[%c0_9, %c0_10] : memref<1x256xf32, #tpu.memory_space<vmem>>, vector<1x256xf32>
    %33 = vector.broadcast %32 : vector<1x256xf32> to vector<16x256xf32>
    %34 = arith.addf %31, %33 : vector<16x256xf32>
    %35 = vector.shape_cast %34 : vector<16x256xf32> to vector<1x16x256xf32>
    %c0_11 = arith.constant 0 : index
    %c0_12 = arith.constant 0 : index
    %c0_13 = arith.constant 0 : index
    %36 = vector.load %arg7[%c0_11, %c0_12, %c0_13] : memref<1x16x256xf32, #tpu.memory_space<vmem>>, vector<1x16x256xf32>
    tpu.vector_store %arg7[%c0_11, %c0_12, %c0_13], %35 {strides = array<i32>} : memref<1x16x256xf32, #tpu.memory_space<vmem>>, vector<1x16x256xf32>,
    return
  }
  func.func @transform_0(%arg0: i32, %arg1: memref<2xi32, #tpu.memory_space<smem>>) -> (i32, i32, i32) {
    %c0_i32 = arith.constant 0 : i32
    %c0_i32_0 = arith.constant 0 : i32
    %c0_i32_1 = arith.constant 0 : i32
    return %arg0, %c0_i32, %c0_i32_0 : i32, i32, i32
  }
  func.func @transform_1(%arg0: i32, %arg1: memref<2xi32, #tpu.memory_space<smem>>) -> (i32, i32) {
    %c0_i32 = arith.constant 0 : i32
    %c0_i32_0 = arith.constant 0 : i32
    %c0_i32_1 = arith.constant 0 : i32
    return %c0_i32, %c0_i32_0 : i32, i32
  }
  func.func @transform_2(%arg0: i32, %arg1: memref<2xi32, #tpu.memory_space<smem>>) -> (i32, i32) {
    %c0_i32 = arith.constant 0 : i32
    %c0_i32_0 = arith.constant 0 : i32
    %c0_i32_1 = arith.constant 0 : i32
    return %c0_i32, %c0_i32_0 : i32, i32
  }
  func.func @transform_3(%arg0: i32, %arg1: memref<2xi32, #tpu.memory_space<smem>>) -> (i32, i32) {
    %c0_i32 = arith.constant 0 : i32
    %c0_i32_0 = arith.constant 0 : i32
    %c0_i32_1 = arith.constant 0 : i32
    return %c0_i32, %c0_i32_0 : i32, i32
  }
  func.func @transform_4(%arg0: i32, %arg1: memref<2xi32, #tpu.memory_space<smem>>) -> (i32, i32) {
    %c0_i32 = arith.constant 0 : i32
    %c0_i32_0 = arith.constant 0 : i32
    %c0_i32_1 = arith.constant 0 : i32
    return %c0_i32, %c0_i32_0 : i32, i32
  }
  func.func @transform_5(%arg0: i32, %arg1: memref<2xi32, #tpu.memory_space<smem>>) -> (i32, i32, i32) {
    %c0_i32 = arith.constant 0 : i32
    %c0_i32_0 = arith.constant 0 : i32
    %c0_i32_1 = arith.constant 0 : i32
    return %arg0, %c0_i32, %c0_i32_0 : i32, i32, i32
  }
}

</mosaic_0001>

<llo_original>
// kernel: conv_block_forward.3
$region0: #{conv_block_forward.3}
  #allocation0 [shape = 'u32[]', space=smem, size = 0x4, offset = 0x4, fixed_abs, tag = 'smem constant byte address 0x4 - core index']
  #allocation1 [shape = 'u32[144,128]{1,0:T(1,128)}', space=vmem, size = 0x12000, scoped, tag = 'internal scratch']
  #allocation2 [shape = 's32[1]{0}', space=sflag, size = 0x4, scoped, tag = 'scoped memory for conv_block_forward.3']
  #allocation3 [shape = 'u8[512]{0}', space=smem, size = 0x200, scoped, tag = 'prefetched SMEM operand 0']
  %s0 = inlined_call_operand.vmem [shape: s32[2], index: 0, kind: input, shape index: {}]
  %s1 = inlined_call_operand.vmem [shape: bf16[2,16,256], index: 1, kind: input, shape index: {}]
  %s2 = inlined_call_operand.vmem [shape: f32[1,256], index: 2, kind: input, shape index: {}]
  %s3 = inlined_call_operand.vmem [shape: f32[1,256], index: 3, kind: input, shape index: {}]
  %s4 = inlined_call_operand.vmem [shape: bf16[256,256], index: 4, kind: input, shape index: {}]
  %s5 = inlined_call_operand.vmem [shape: f32[1,256], index: 5, kind: input, shape index: {}]
  %s6 = inlined_call_operand.hbm [shape: f32[2,16,256], index: 6, kind: output, shape index: {}]
  %s7 = sld [smem:[#allocation0]]
  $region53: #{conv_block_forward.3} parent=0
    _
  %s9 = ssub.s32 1, %s7
  %s10 = scalar_select 0, %s9, %s7
  %s11 = sshll.u32 %s0, 4
  %s12 = int_to_ptr.vmem [resolvable:$true] %s11
  %14 = dma.vmem_to_smem %s12, 16, [#allocation3], [#allocation2]
  %15 = dma.done [#allocation2], 16
  %16 = sfence
  $region1: #{conv_block_forward.3} parent=0
    #allocation4 [shape = 'u8[32768]{0}', space=vmem, size = 0x8000, scoped, tag = 'output window, operand 0']
    #allocation5 [shape = 's32[2]{0}', space=sflag, size = 0x8, scoped, tag = 'scoped memory for conv_block_forward.3']
    %17 = vsyncpa [#allocation5], 0
    %s18 = scalar_lea.sflag [#allocation5], 1
    %19 = vsyncpa %s18, 0
    loop: start=0, step=1, limit=4
    $region2: #{conv_block_forward.3} parent=1 // loop_pre_header
      _
    $region3: #{conv_block_forward.3} parent=1 // loop_header
      %s21 = sphi 0, %s25
      %p22 = scmp.ge.s32.totalorder %s21, 4
      %s31 = sphi 0, %s33
      %s34 = sphi 0, %s31
      %s35 = sphi 0, %s34
      %s51 = sphi 0, %s35
      %s55 = sphi 0, %s55
      %s57 = sphi 0, %s55
      %s58 = sphi 0, %s57
      %s72 = sphi 0, %s58
      %s76 = sphi 0, %s76
      %s78 = sphi 0, %s76
      %s79 = sphi 0, %s78
      %s93 = sphi 0, %s79
      %s97 = sphi 0, %s97
      %s99 = sphi 0, %s97
      %s100 = sphi 0, %s99
      %s114 = sphi 0, %s100
      %s118 = sphi 0, %s118
      %s120 = sphi 0, %s118
      %s121 = sphi 0, %s120
      %s135 = sphi 0, %s121
      %s141 = sphi 0, %s143
      %s144 = sphi 0, %s141
      %s145 = sphi 0, %s144
      %s161 = sphi 0, %s145
    $region4: #{conv_block_forward.3} parent=1 // loop_header_branch
      %24 = sbr.rel (%p22) target = $region8
    $region5: #{conv_block_forward.3} parent=1 // loop_body
      %s26 = ssub.s32 %s21, 1
      %s27 = ssub.s32 %s21, 2
      %s28 = sadd.s32 %s21, 1
      %s29 = ssub.s32 %s21, %s28
      %p30 = scmp.eq.s32.totalorder %s29, 0
      %s32 = sadd.s32 %s31, 1
      %s33 = scalar_select %p30, %s31, %s32
      %p36 = pneg %p30
      %p37 = scmp.eq.s32.totalorder %s21, 1
      %p38 = por %p36, %p37
      %p39 = scmp.ne.s32.totalorder %s31, %s34
      %p40 = scmp.eq.s32.totalorder %s21, 0
      %p41 = por %p39, %p40
      %p42 = scmp.ne.s32.totalorder %s31, %s34
      %p43 = scmp.eq.s32.totalorder %s26, 1
      %p44 = por %p42, %p43
      %p45 = scmp.ne.s32.totalorder %s34, %s35
      %p46 = scmp.eq.s32.totalorder %s26, 0
      %p47 = por %p45, %p46
      %p48 = scmp.ne.s32.totalorder %s34, %s35
      %p49 = scmp.eq.s32.totalorder %s27, 1
      %p50 = por %p48, %p49
      %p52 = scmp.ne.s32.totalorder %s35, %s51
      %p53 = scmp.eq.s32.totalorder %s27, 0
      %p54 = por %p52, %p53
      %s56 = sadd.s32 %s55, 1
      %p59 = scmp.eq.s32.totalorder %s21, 1
      %p60 = scmp.ne.s32.totalorder %s55, %s57
      %p61 = scmp.eq.s32.totalorder %s21, 0
      %p62 = por %p60, %p61
      %p63 = scmp.ne.s32.totalorder %s55, %s57
      %p64 = scmp.eq.s32.totalorder %s26, 1
      %p65 = por %p63, %p64
      %p66 = scmp.ne.s32.totalorder %s57, %s58
      %p67 = scmp.eq.s32.totalorder %s26, 0
      %p68 = por %p66, %p67
      %p69 = scmp.ne.s32.totalorder %s57, %s58
      %p70 = scmp.eq.s32.totalorder %s27, 1
      %p71 = por %p69, %p70
      %p73 = scmp.ne.s32.totalorder %s58, %s72
      %p74 = scmp.eq.s32.totalorder %s27, 0
      %p75 = por %p73, %p74
      %s77 = sadd.s32 %s76, 1
      %p80 = scmp.eq.s32.totalorder %s21, 1
      %p81 = scmp.ne.s32.totalorder %s76, %s78
      %p82 = scmp.eq.s32.totalorder %s21, 0
      %p83 = por %p81, %p82
      %p84 = scmp.ne.s32.totalorder %s76, %s78
      %p85 = scmp.eq.s32.totalorder %s26, 1
      %p86 = por %p84, %p85
      %p87 = scmp.ne.s32.totalorder %s78, %s79
      %p88 = scmp.eq.s32.totalorder %s26, 0
      %p89 = por %p87, %p88
      %p90 = scmp.ne.s32.totalorder %s78, %s79
      %p91 = scmp.eq.s32.totalorder %s27, 1
      %p92 = por %p90, %p91
      %p94 = scmp.ne.s32.totalorder %s79, %s93
      %p95 = scmp.eq.s32.totalorder %s27, 0
      %p96 = por %p94, %p95
      %s98 = sadd.s32 %s97, 1
      %p101 = scmp.eq.s32.totalorder %s21, 1
      %p102 = scmp.ne.s32.totalorder %s97, %s99
      %p103 = scmp.eq.s32.totalorder %s21, 0
      %p104 = por %p102, %p103
      %p105 = scmp.ne.s32.totalorder %s97, %s99
      %p106 = scmp.eq.s32.totalorder %s26, 1
      %p107 = por %p105, %p106
      %p108 = scmp.ne.s32.totalorder %s99, %s100
      %p109 = scmp.eq.s32.totalorder %s26, 0
      %p110 = por %p108, %p109
      %p111 = scmp.ne.s32.totalorder %s99, %s100
      %p112 = scmp.eq.s32.totalorder %s27, 1
      %p113 = por %p111, %p112
      %p115 = scmp.ne.s32.totalorder %s100, %s114
      %p116 = scmp.eq.s32.totalorder %s27, 0
      %p117 = por %p115, %p116
      %s119 = sadd.s32 %s118, 1
      %p122 = scmp.eq.s32.totalorder %s21, 1
      %p123 = scmp.ne.s32.totalorder %s118, %s120
      %p124 = scmp.eq.s32.totalorder %s21, 0
      %p125 = por %p123, %p124
      %p126 = scmp.ne.s32.totalorder %s118, %s120
      %p127 = scmp.eq.s32.totalorder %s26, 1
      %p128 = por %p126, %p127
      %p129 = scmp.ne.s32.totalorder %s120, %s121
      %p130 = scmp.eq.s32.totalorder %s26, 0
      %p131 = por %p129, %p130
      %p132 = scmp.ne.s32.totalorder %s120, %s121
      %p133 = scmp.eq.s32.totalorder %s27, 1
      %p134 = por %p132, %p133
      %p136 = scmp.ne.s32.totalorder %s121, %s135
      %p137 = scmp.eq.s32.totalorder %s27, 0
      %p138 = por %p136, %p137
      %s139 = ssub.s32 %s21, %s28
      %p140 = scmp.eq.s32.totalorder %s139, 0
      %s142 = sadd.s32 %s141, 1
      %s143 = scalar_select %p140, %s141, %s142
      %p146 = pneg %p140
      %p147 = scmp.eq.s32.totalorder %s21, 1
      %p148 = por %p146, %p147
      %p149 = scmp.ne.s32.totalorder %s141, %s144
      %p150 = scmp.eq.s32.totalorder %s21, 0
      %p151 = por %p149, %p150
      %p152 = scmp.ne.s32.totalorder %s141, %s144
      %p153 = scmp.eq.s32.totalorder %s26, 1
      %p154 = por %p152, %p153
      %p155 = scmp.ne.s32.totalorder %s144, %s145
      %p156 = scmp.eq.s32.totalorder %s26, 0
      %p157 = por %p155, %p156
      %p158 = scmp.ne.s32.totalorder %s144, %s145
      %p159 = scmp.eq.s32.totalorder %s27, 1
      %p160 = por %p158, %p159
      %p162 = scmp.ne.s32.totalorder %s145, %s161
      %p163 = scmp.eq.s32.totalorder %s27, 0
      %p164 = por %p162, %p163
      %p165 = scmp.le.s32.totalorder 1, %s21
      %p166 = scmp.lt.s32.totalorder %s21, 3
      %p167 = pnand %p165, %p166
      %p168 = pneg %p167
      // Predicated region
      $region9: #{conv_block_forward.3} parent=5 // pred_check
        _
      $region10: #{conv_block_forward.3} parent=5 // pred_check_branch
        %170 = sbr.rel (%p167) target = $region12
      $region11: #{conv_block_forward.3} parent=5 // pred_region
        %s171 = ssub.s32 %s21, 1
        // Predicated region
        $region13: #{conv_block_forward.3} parent=11 // pred_check
          %p172 = pneg %p68
        $region14: #{conv_block_forward.3} parent=11 // pred_check_branch
          %174 = sbr.rel (%p172) target = $region16
        $region15: #{conv_block_forward.3} parent=11 // pred_region
          _
        $region16: #{conv_block_forward.3} parent=11 // pred_fallthru
          _
        // Predicated region
        $region17: #{conv_block_forward.3} parent=11 // pred_check
          %p175 = pneg %p89
        $region18: #{conv_block_forward.3} parent=11 // pred_check_branch
          %177 = sbr.rel (%p175) target = $region20
        $region19: #{conv_block_forward.3} parent=11 // pred_region
          _
        $region20: #{conv_block_forward.3} parent=11 // pred_fallthru
          _
        // Predicated region
        $region21: #{conv_block_forward.3} parent=11 // pred_check
          %p178 = pneg %p110
        $region22: #{conv_block_forward.3} parent=11 // pred_check_branch
          %180 = sbr.rel (%p178) target = $region24
        $region23: #{conv_block_forward.3} parent=11 // pred_region
          _
        $region24: #{conv_block_forward.3} parent=11 // pred_fallthru
          _
        // Predicated region
        $region25: #{conv_block_forward.3} parent=11 // pred_check
          %p181 = pneg %p131
        $region26: #{conv_block_forward.3} parent=11 // pred_check_branch
          %183 = sbr.rel (%p181) target = $region28
        $region27: #{conv_block_forward.3} parent=11 // pred_region
          _
        $region28: #{conv_block_forward.3} parent=11 // pred_fallthru
          _
      $region12: #{conv_block_forward.3} parent=5 // pred_fallthru
        _
      %p184 = scmp.lt.s32.totalorder %s21, 2
      // Predicated region
      $region29: #{conv_block_forward.3} parent=5 // pred_check
        %p185 = pneg %p184
      $region30: #{conv_block_forward.3} parent=5 // pred_check_branch
        %187 = sbr.rel (%p185) target = $region32
      $region31: #{conv_block_forward.3} parent=5 // pred_region
        // Predicated region
        $region33: #{conv_block_forward.3} parent=31 // pred_check
          %p188 = pneg %p41
        $region34: #{conv_block_forward.3} parent=31 // pred_check_branch
          %190 = sbr.rel (%p188) target = $region36
        $region35: #{conv_block_forward.3} parent=31 // pred_region
          %p191 = scmp.lt.s32.totalorder %s21, 1
          %s192 = scalar_select %p191, %s21, 1
          %s193 = smul.addr %s192, 4
          %s194 = smul.addr %s193, 4
          %s195 = scalar_lea.vmem %s1, %s194
        $region36: #{conv_block_forward.3} parent=31 // pred_fallthru
          _
      $region32: #{conv_block_forward.3} parent=5 // pred_fallthru
        _
      %p196 = scmp.le.s32.totalorder 1, %s21
      %p197 = scmp.lt.s32.totalorder %s21, 3
      %p198 = pnand %p196, %p197
      %p199 = pneg %p198
      // Predicated region
      $region37: #{conv_block_forward.3} parent=5 // pred_check
        _
      $region38: #{conv_block_forward.3} parent=5 // pred_check_branch
        %201 = sbr.rel (%p198) target = $region40
      $region39: #{conv_block_forward.3} parent=5 // pred_region
        %s202 = ssub.s32 %s21, 1
        %p203 = scmp.lt.s32.totalorder %s26, 1
        %s204 = scalar_select %p203, %s26, 1
        %s205 = smul.addr %s204, 4
        %s206 = smul.addr %s205, 4
        %s207 = scalar_lea.vmem %s1, %s206
        %p208 = pneg %p47
        %p209 = pneg %p44
        %p210 = pneg %p68
        %p211 = pneg %p65
        %p212 = pneg %p89
        %p213 = pneg %p86
        %p214 = pneg %p110
        %p215 = pneg %p107
        %p216 = pneg %p131
        %p217 = pneg %p128
        %p218 = pneg %p157
        %p219 = pneg %p154
        %s220 = sand.u32 %s144, 1
        %s221 = scalar_lea.sflag [#allocation5], %s220
        %s222 = sand.u32 %s144, 1
        %s223 = smul.addr %s222, 32
        %s224 = scalar_lea.vmem [#allocation4], %s223
        %p225 = scmp.lt.s32.totalorder %s26, 1
        %s226 = scalar_select %p225, %s26, 1
        %s227 = smul.addr %s226, 4
        %s228 = smul.addr %s227, 4
        %s229 = scalar_lea.vmem %s1, %s228
        %s230 = sld [smem:[#allocation3 + %s26]]
        %v231 = vlaneseq
        %v232 = vshrl.u32 %v231, 7
        %v233 = vadd.s32 %v232, 8
        %v234 = vstv %s230
        %vm235 = vcmp.lt.s32.totalorder %v232, %v234
        %vm236 = vcmp.lt.s32.totalorder %v233, %v234
        %v237 = vsel %vm235, 1, 0
        %v238 = vsel %vm236, 1, 0
        %v239 = vcvt.s32.f32 %v237
        %v240 = vcvt.s32.f32 %v238
        %v241 = vld [vmem:[%s229] sm:$0xff]
        %v242 = vld [vmem:[%s229 + $0x8] sm:$0xff]
        %v243 = vunpack.c.l.bf16 %v241
        %v244 = vunpack.c.h.bf16 %v241
        %v245 = vunpack.c.l.bf16 %v242
        %v246 = vunpack.c.h.bf16 %v242
        %v247 = vld [vmem:[%s2] sm:$0x3]
        %v249 = vlaneseq
        %v250 = vshrl.u32 %v249, 7
        %v251 = vsub.s32 0, %v250
        %v252 = vrot.slane %v247, %v251
        %v253 = vlaneseq
        %v254 = vshrl.u32 %v253, 7
        %v255 = vsub.s32 1, %v254
        %v256 = vrot.slane %v247, %v255
        %v259 = vmul.f32 %v243, %v252
        %v260 = vmul.f32 %v244, %v256
        %v261 = vmul.f32 %v245, %v252
        %v262 = vmul.f32 %v246, %v256
        %v263 = vld [vmem:[%s3] sm:$0x3]
        %v265 = vlaneseq
        %v266 = vshrl.u32 %v265, 7
        %v267 = vsub.s32 0, %v266
        %v268 = vrot.slane %v263, %v267
        %v269 = vlaneseq
        %v270 = vshrl.u32 %v269, 7
        %v271 = vsub.s32 1, %v270
        %v272 = vrot.slane %v263, %v271
        %v275 = vadd.f32 %v259, %v268
        %v276 = vadd.f32 %v260, %v272
        %v277 = vadd.f32 %v261, %v268
        %v278 = vadd.f32 %v262, %v272
        %v279 = vmul.f32 %v275, %v239
        %v280 = vmul.f32 %v276, %v239
        %v281 = vmul.f32 %v277, %v240
        %v282 = vmul.f32 %v278, %v240
        %v283 = vxor.u32 %v279, 2147483648
        %v284 = vxor.u32 %v280, 2147483648
        %v285 = vxor.u32 %v281, 2147483648
        %v286 = vxor.u32 %v282, 2147483648
        %v287 = vmul.f32 %v283, 1.442695
        %v288 = vpow.pop %v287
        %v289 = vmul.f32 %v284, 1.442695
        %v290 = vpow.pop %v289
        %v291 = vmul.f32 %v285, 1.442695
        %v292 = vpow.pop %v291
        %v293 = vmul.f32 %v286, 1.442695
        %v294 = vpow.pop %v293
        %v295 = vadd.f32 %v288, 1.0
        %v296 = vadd.f32 %v290, 1.0
        %v297 = vadd.f32 %v292, 1.0
        %v298 = vadd.f32 %v294, 1.0
        %v299 = vrcp.pop %v295
        %v300 = vmul.f32 1.0, %v299
        %v301 = vrcp.pop %v296
        %v302 = vmul.f32 1.0, %v301
        %v303 = vrcp.pop %v297
        %v304 = vmul.f32 1.0, %v303
        %v305 = vrcp.pop %v298
        %v306 = vmul.f32 1.0, %v305
        %v307 = vmul.f32 %v279, %v300
        %v308 = vmul.f32 %v280, %v302
        %v309 = vmul.f32 %v281, %v304
        %v310 = vmul.f32 %v282, %v306
        %v311 = vpack.c.bf16 %v309, %v307
        %v312 = vpack.c.bf16 %v310, %v308
        %v313 = vld [vmem:[%s4] sm:$0xff]
        %v314 = vld [vmem:[%s4 + $0x8] sm:$0xff]
        %v315 = vld [vmem:[%s4 + $0x10] sm:$0xff]
        %v316 = vld [vmem:[%s4 + $0x18] sm:$0xff]
        %v317 = vld [vmem:[%s4 + $0x20] sm:$0xff]
        %v318 = vld [vmem:[%s4 + $0x28] sm:$0xff]
        %v319 = vld [vmem:[%s4 + $0x30] sm:$0xff]
        %v320 = vld [vmem:[%s4 + $0x38] sm:$0xff]
        %v321 = vld [vmem:[%s4 + $0x40] sm:$0xff]
        %v322 = vld [vmem:[%s4 + $0x48] sm:$0xff]
        %v323 = vld [vmem:[%s4 + $0x50] sm:$0xff]
        %v324 = vld [vmem:[%s4 + $0x58] sm:$0xff]
        %v325 = vld [vmem:[%s4 + $0x60] sm:$0xff]
        %v326 = vld [vmem:[%s4 + $0x68] sm:$0xff]
        %v327 = vld [vmem:[%s4 + $0x70] sm:$0xff]
        %v328 = vld [vmem:[%s4 + $0x78] sm:$0xff]
        %v329 = vld [vmem:[%s4 + $0x80] sm:$0xff]
        %v330 = vld [vmem:[%s4 + $0x88] sm:$0xff]
        %v331 = vld [vmem:[%s4 + $0x90] sm:$0xff]
        %v332 = vld [vmem:[%s4 + $0x98] sm:$0xff]
        %v333 = vld [vmem:[%s4 + $0xa0] sm:$0xff]
        %v334 = vld [vmem:[%s4 + $0xa8] sm:$0xff]
        %v335 = vld [vmem:[%s4 + $0xb0] sm:$0xff]
        %v336 = vld [vmem:[%s4 + $0xb8] sm:$0xff]
        %v337 = vld [vmem:[%s4 + $0xc0] sm:$0xff]
        %v338 = vld [vmem:[%s4 + $0xc8] sm:$0xff]
        %v339 = vld [vmem:[%s4 + $0xd0] sm:$0xff]
        %v340 = vld [vmem:[%s4 + $0xd8] sm:$0xff]
        %v341 = vld [vmem:[%s4 + $0xe0] sm:$0xff]
        %v342 = vld [vmem:[%s4 + $0xe8] sm:$0xff]
        %v343 = vld [vmem:[%s4 + $0xf0] sm:$0xff]
        %v344 = vld [vmem:[%s4 + $0xf8] sm:$0xff]
        %v345 = vld [vmem:[%s5] sm:$0x3]
        %v347 = vlaneseq
        %v348 = vshrl.u32 %v347, 7
        %v349 = vsub.s32 0, %v348
        %v350 = vrot.slane %v345, %v349
        %v351 = vlaneseq
        %v352 = vshrl.u32 %v351, 7
        %v353 = vsub.s32 1, %v352
        %v354 = vrot.slane %v345, %v353
        %v389 = vunpack.c.l.b16 %v313
        %v390 = vunpack.c.h.b16 %v313
        %v391 = vunpack.c.l.b16 %v314
        %v392 = vunpack.c.h.b16 %v314
        %v393 = vunpack.c.l.b16 %v315
        %v394 = vunpack.c.h.b16 %v315
        %v395 = vunpack.c.l.b16 %v316
        %v396 = vunpack.c.h.b16 %v316
        %v397 = vunpack.c.l.b16 %v317
        %v398 = vunpack.c.h.b16 %v317
        %v399 = vunpack.c.l.b16 %v318
        %v400 = vunpack.c.h.b16 %v318
        %v401 = vunpack.c.l.b16 %v319
        %v402 = vunpack.c.h.b16 %v319
        %v403 = vunpack.c.l.b16 %v320
        %v404 = vunpack.c.h.b16 %v320
        %v405 = vunpack.c.l.b16 %v321
        %v406 = vunpack.c.h.b16 %v321
        %v407 = vunpack.c.l.b16 %v322
        %v408 = vunpack.c.h.b16 %v322
        %v409 = vunpack.c.l.b16 %v323
        %v410 = vunpack.c.h.b16 %v323
        %v411 = vunpack.c.l.b16 %v324
        %v412 = vunpack.c.h.b16 %v324
        %v413 = vunpack.c.l.b16 %v325
        %v414 = vunpack.c.h.b16 %v325
        %v415 = vunpack.c.l.b16 %v326
        %v416 = vunpack.c.h.b16 %v326
        %v417 = vunpack.c.l.b16 %v327
        %v418 = vunpack.c.h.b16 %v327
        %v419 = vunpack.c.l.b16 %v328
        %v420 = vunpack.c.h.b16 %v328
        %v421 = vunpack.c.l.b16 %v329
        %v422 = vunpack.c.h.b16 %v329
        %v423 = vunpack.c.l.b16 %v330
        %v424 = vunpack.c.h.b16 %v330
        %v425 = vunpack.c.l.b16 %v331
        %v426 = vunpack.c.h.b16 %v331
        %v427 = vunpack.c.l.b16 %v332
        %v428 = vunpack.c.h.b16 %v332
        %v429 = vunpack.c.l.b16 %v333
        %v430 = vunpack.c.h.b16 %v333
        %v431 = vunpack.c.l.b16 %v334
        %v432 = vunpack.c.h.b16 %v334
        %v433 = vunpack.c.l.b16 %v335
        %v434 = vunpack.c.h.b16 %v335
        %v435 = vunpack.c.l.b16 %v336
        %v436 = vunpack.c.h.b16 %v336
        %v437 = vunpack.c.l.b16 %v337
        %v438 = vunpack.c.h.b16 %v337
        %v439 = vunpack.c.l.b16 %v338
        %v440 = vunpack.c.h.b16 %v338
        %v441 = vunpack.c.l.b16 %v339
        %v442 = vunpack.c.h.b16 %v339
        %v443 = vunpack.c.l.b16 %v340
        %v444 = vunpack.c.h.b16 %v340
        %v445 = vunpack.c.l.b16 %v341
        %v446 = vunpack.c.h.b16 %v341
        %v447 = vunpack.c.l.b16 %v342
        %v448 = vunpack.c.h.b16 %v342
        %v449 = vunpack.c.l.b16 %v343
        %v450 = vunpack.c.h.b16 %v343
        %v451 = vunpack.c.l.b16 %v344
        %v452 = vunpack.c.h.b16 %v344
        %v453 = vpack.c.b16 %v391, %v389
        %v454 = vpack.c.b16 %v392, %v390
        %v455 = vpack.c.b16 %v395, %v393
        %v456 = vpack.c.b16 %v396, %v394
        %v457 = vpack.c.b16 %v399, %v397
        %v458 = vpack.c.b16 %v400, %v398
        %v459 = vpack.c.b16 %v403, %v401
        %v460 = vpack.c.b16 %v404, %v402
        %v461 = vpack.c.b16 %v407, %v405
        %v462 = vpack.c.b16 %v408, %v406
        %v463 = vpack.c.b16 %v411, %v409
        %v464 = vpack.c.b16 %v412, %v410
        %v465 = vpack.c.b16 %v415, %v413
        %v466 = vpack.c.b16 %v416, %v414
        %v467 = vpack.c.b16 %v419, %v417
        %v468 = vpack.c.b16 %v420, %v418
        %v469 = vpack.c.b16 %v423, %v421
        %v470 = vpack.c.b16 %v424, %v422
        %v471 = vpack.c.b16 %v427, %v425
        %v472 = vpack.c.b16 %v428, %v426
        %v473 = vpack.c.b16 %v431, %v429
        %v474 = vpack.c.b16 %v432, %v430
        %v475 = vpack.c.b16 %v435, %v433
        %v476 = vpack.c.b16 %v436, %v434
        %v477 = vpack.c.b16 %v439, %v437
        %v478 = vpack.c.b16 %v440, %v438
        %v479 = vpack.c.b16 %v443, %v441
        %v480 = vpack.c.b16 %v444, %v442
        %v481 = vpack.c.b16 %v447, %v445
        %v482 = vpack.c.b16 %v448, %v446
        %v483 = vpack.c.b16 %v451, %v449
        %v484 = vpack.c.b16 %v452, %v450
        %517 = vmatprep.subr.bf16.mxu0 %v454
        %518 = vmatpush1.bf16.msra.mxu0 %v453
        %519 = vmatprep.subr.bf16.mxu0 %v456
        %520 = vmatpush1.bf16.msra.mxu0 %v455
        %521 = vmatprep.subr.bf16.mxu0 %v458
        %522 = vmatpush1.bf16.msra.mxu0 %v457
        %523 = vmatprep.subr.bf16.mxu0 %v460
        %524 = vmatpush1.bf16.msra.mxu0 %v459
        %525 = vmatprep.subr.bf16.mxu0 %v462
        %526 = vmatpush1.bf16.msra.mxu0 %v461
        %527 = vmatprep.subr.bf16.mxu0 %v464
        %528 = vmatpush1.bf16.msra.mxu0 %v463
        %529 = vmatprep.subr.bf16.mxu0 %v466
        %530 = vmatpush1.bf16.msra.mxu0 %v465
        %531 = vmatprep.subr.bf16.mxu0 %v468
        %532 = vmatpush1.bf16.msra.mxu0 %v467
        %533 = vmatprep.subr.bf16.mxu0 %v470
        %534 = vmatpush1.bf16.msra.mxu0 %v469
        %535 = vmatprep.subr.bf16.mxu0 %v472
        %536 = vmatpush1.bf16.msra.mxu0 %v471
        %537 = vmatprep.subr.bf16.mxu0 %v474
        %538 = vmatpush1.bf16.msra.mxu0 %v473
        %539 = vmatprep.subr.bf16.mxu0 %v476
        %540 = vmatpush1.bf16.msra.mxu0 %v475
        %541 = vmatprep.subr.bf16.mxu0 %v478
        %542 = vmatpush1.bf16.msra.mxu0 %v477
        %543 = vmatprep.subr.bf16.mxu0 %v480
        %544 = vmatpush1.bf16.msra.mxu0 %v479
        %545 = vmatprep.subr.bf16.mxu0 %v482
        %546 = vmatpush1.bf16.msra.mxu0 %v481
        %547 = vmatprep.subr.bf16.mxu0 %v484
        %548 = vmatpush1.bf16.msra.mxu0 %v483
        %549 = vmatprep.mubr.bf16.mxu0 %v312
        %550 = vmatmul.mubr.bf16.gmra.mrb[0].mxu0 %v311
        %v551 = vpop.f32.mrb[0].mxu0
        %v552 = vadd.f32 %v350, %v551
        %v553 = vpop.f32.mrb[0].mxu0
        %v554 = vadd.f32 %v354, %v553
        %v555 = vpop.f32.mrb[0].mxu0
        %v556 = vadd.f32 %v350, %v555
        %v557 = vpop.f32.mrb[0].mxu0
        %v558 = vadd.f32 %v354, %v557
        %559 = vdwg.mxu0
        %560 = vst [vmem:[%s224] sm:$0xff] %v552
        %561 = vst [vmem:[%s224 + $0x8] sm:$0xff] %v554
        %562 = vst [vmem:[%s224 + $0x10] sm:$0xff] %v556
        %563 = vst [vmem:[%s224 + $0x18] sm:$0xff] %v558
        %s564 = sand.u32 %s144, 1
        %s565 = scalar_lea.sflag [#allocation5], %s564
        %s566 = sand.u32 %s144, 1
        %s567 = smul.addr %s566, 32
        %s568 = scalar_lea.vmem [#allocation4], %s567
        // Predicated region
        $region41: #{conv_block_forward.3} parent=39 // pred_check
          %p569 = pneg %p154
        $region42: #{conv_block_forward.3} parent=39 // pred_check_branch
          %571 = sbr.rel (%p569) target = $region44
        $region43: #{conv_block_forward.3} parent=39 // pred_region
          %s573 = ssub.s32 512, 512
          %574 = vsyncadd %s565, %s573
          %s575 = smul.addr %s26, 4
          %s576 = smul.addr %s575, 128
          %s577 = scalar_lea.hbm %s6, %s576
          %s578 = sshll.u32 %s568, 4
          %s579 = int_to_ptr.vmem [resolvable:$true] %s578
          %584 = dma.vmem_to_hbm [thread:$0]  %s579, 512, %s577, %s565, 256, 256, 16
        $region44: #{conv_block_forward.3} parent=39 // pred_fallthru
          _
      $region40: #{conv_block_forward.3} parent=5 // pred_fallthru
        _
      %p585 = scmp.le.s32.totalorder 2, %s21
      // Predicated region
      $region45: #{conv_block_forward.3} parent=5 // pred_check
        %p586 = pneg %p585
      $region46: #{conv_block_forward.3} parent=5 // pred_check_branch
        %588 = sbr.rel (%p586) target = $region48
      $region47: #{conv_block_forward.3} parent=5 // pred_region
        %s589 = ssub.s32 %s21, 2
        // Predicated region
        $region49: #{conv_block_forward.3} parent=47 // pred_check
          %p590 = pneg %p160
        $region50: #{conv_block_forward.3} parent=47 // pred_check_branch
          %592 = sbr.rel (%p590) target = $region52
        $region51: #{conv_block_forward.3} parent=47 // pred_region
          %s593 = sand.u32 %s145, 1
          %s594 = scalar_lea.sflag [#allocation5], %s593
          %s595 = sand.u32 %s145, 1
          %s596 = smul.addr %s595, 32
          %s597 = scalar_lea.vmem [#allocation4], %s596
          %598 = dma.done %s594, 512
        $region52: #{conv_block_forward.3} parent=47 // pred_fallthru
          _
      $region48: #{conv_block_forward.3} parent=5 // pred_fallthru
        _
    $region6: #{conv_block_forward.3} parent=1 // loop_footer
      %s25 = sadd.s32 1, %s21
    $region7: #{conv_block_forward.3} parent=1 // loop_footer_branch
      %20 = sbr.rel target = $region3
    $region8: #{conv_block_forward.3} parent=1 // loop_exit
      _
    %599 = vsyncpa [#allocation5], 1
    %s600 = scalar_lea.sflag [#allocation5], 1
    %601 = vsyncpa %s600, 1

// kernel: conv_block_forward.2
$region0: #{conv_block_forward.2}
  #allocation0 [shape = 'u32[]', space=smem, size = 0x4, offset = 0x4, fixed_abs, tag = 'smem constant byte address 0x4 - core index']
  #allocation1 [shape = 'u32[144,128]{1,0:T(1,128)}', space=vmem, size = 0x12000, scoped, tag = 'internal scratch']
  #allocation2 [shape = 's32[1]{0}', space=sflag, size = 0x4, scoped, tag = 'scoped memory for conv_block_forward.2']
  #allocation3 [shape = 'u8[512]{0}', space=smem, size = 0x200, scoped, tag = 'prefetched SMEM operand 0']
  %s0 = inlined_call_operand.vmem [shape: s32[2], index: 0, kind: input, shape index: {}]
  %s1 = inlined_call_operand.vmem [shape: f32[2,16,256], index: 1, kind: input, shape index: {}]
  %s2 = inlined_call_operand.vmem [shape: f32[1,256], index: 2, kind: input, shape index: {}]
  %s3 = inlined_call_operand.vmem [shape: f32[1,256], index: 3, kind: input, shape index: {}]
  %s4 = inlined_call_operand.vmem [shape: bf16[256,512], index: 4, kind: input, shape index: {}]
  %s5 = inlined_call_operand.vmem [shape: f32[1,512], index: 5, kind: input, shape index: {}]
  %s6 = inlined_call_operand.vmem [shape: f32[5,256], index: 6, kind: input, shape index: {}]
  %s7 = inlined_call_operand.vmem [shape: bf16[2,16,256], index: 7, kind: output, shape index: {0}]
  %s8 = inlined_call_operand.vmem [shape: f32[2,2,256], index: 8, kind: output, shape index: {1}]
  %9 = xla_tuple %s7, %s8
  %s10 = sld [smem:[#allocation0]]
  $region65: #{conv_block_forward.2} parent=0
    _
  %s12 = ssub.s32 1, %s10
  %s13 = scalar_select 0, %s12, %s10
  %s14 = sshll.u32 %s0, 4
  %s15 = int_to_ptr.vmem [resolvable:$true] %s14
  %17 = dma.vmem_to_smem %s15, 16, [#allocation3], [#allocation2]
  %18 = dma.done [#allocation2], 16
  %19 = sfence
  loop: start=0, step=1, limit=4
  $region2: #{conv_block_forward.2} parent=0 // loop_pre_header
    _
  $region3: #{conv_block_forward.2} parent=0 // loop_header
    %s21 = sphi 0, %s25
    %p22 = scmp.ge.s32.totalorder %s21, 4
    %s31 = sphi 0, %s33
    %s34 = sphi 0, %s31
    %s35 = sphi 0, %s34
    %s51 = sphi 0, %s35
    %s55 = sphi 0, %s55
    %s57 = sphi 0, %s55
    %s58 = sphi 0, %s57
    %s72 = sphi 0, %s58
    %s76 = sphi 0, %s76
    %s78 = sphi 0, %s76
    %s79 = sphi 0, %s78
    %s93 = sphi 0, %s79
    %s97 = sphi 0, %s97
    %s99 = sphi 0, %s97
    %s100 = sphi 0, %s99
    %s114 = sphi 0, %s100
    %s118 = sphi 0, %s118
    %s120 = sphi 0, %s118
    %s121 = sphi 0, %s120
    %s135 = sphi 0, %s121
    %s139 = sphi 0, %s139
    %s141 = sphi 0, %s139
    %s142 = sphi 0, %s141
    %s156 = sphi 0, %s142
    %s162 = sphi 0, %s164
    %s165 = sphi 0, %s162
    %s166 = sphi 0, %s165
    %s182 = sphi 0, %s166
    %s188 = sphi 0, %s190
    %s191 = sphi 0, %s188
    %s192 = sphi 0, %s191
    %s208 = sphi 0, %s192
  $region4: #{conv_block_forward.2} parent=0 // loop_header_branch
    %24 = sbr.rel (%p22) target = $region8
  $region5: #{conv_block_forward.2} parent=0 // loop_body
    %s26 = ssub.s32 %s21, 1
    %s27 = ssub.s32 %s21, 2
    %s28 = sadd.s32 %s21, 1
    %s29 = ssub.s32 %s21, %s28
    %p30 = scmp.eq.s32.totalorder %s29, 0
    %s32 = sadd.s32 %s31, 1
    %s33 = scalar_select %p30, %s31, %s32
    %p36 = pneg %p30
    %p37 = scmp.eq.s32.totalorder %s21, 1
    %p38 = por %p36, %p37
    %p39 = scmp.ne.s32.totalorder %s31, %s34
    %p40 = scmp.eq.s32.totalorder %s21, 0
    %p41 = por %p39, %p40
    %p42 = scmp.ne.s32.totalorder %s31, %s34
    %p43 = scmp.eq.s32.totalorder %s26, 1
    %p44 = por %p42, %p43
    %p45 = scmp.ne.s32.totalorder %s34, %s35
    %p46 = scmp.eq.s32.totalorder %s26, 0
    %p47 = por %p45, %p46
    %p48 = scmp.ne.s32.totalorder %s34, %s35
    %p49 = scmp.eq.s32.totalorder %s27, 1
    %p50 = por %p48, %p49
    %p52 = scmp.ne.s32.totalorder %s35, %s51
    %p53 = scmp.eq.s32.totalorder %s27, 0
    %p54 = por %p52, %p53
    %s56 = sadd.s32 %s55, 1
    %p59 = scmp.eq.s32.totalorder %s21, 1
    %p60 = scmp.ne.s32.totalorder %s55, %s57
    %p61 = scmp.eq.s32.totalorder %s21, 0
    %p62 = por %p60, %p61
    %p63 = scmp.ne.s32.totalorder %s55, %s57
    %p64 = scmp.eq.s32.totalorder %s26, 1
    %p65 = por %p63, %p64
    %p66 = scmp.ne.s32.totalorder %s57, %s58
    %p67 = scmp.eq.s32.totalorder %s26, 0
    %p68 = por %p66, %p67
    %p69 = scmp.ne.s32.totalorder %s57, %s58
    %p70 = scmp.eq.s32.totalorder %s27, 1
    %p71 = por %p69, %p70
    %p73 = scmp.ne.s32.totalorder %s58, %s72
    %p74 = scmp.eq.s32.totalorder %s27, 0
    %p75 = por %p73, %p74
    %s77 = sadd.s32 %s76, 1
    %p80 = scmp.eq.s32.totalorder %s21, 1
    %p81 = scmp.ne.s32.totalorder %s76, %s78
    %p82 = scmp.eq.s32.totalorder %s21, 0
    %p83 = por %p81, %p82
    %p84 = scmp.ne.s32.totalorder %s76, %s78
    %p85 = scmp.eq.s32.totalorder %s26, 1
    %p86 = por %p84, %p85
    %p87 = scmp.ne.s32.totalorder %s78, %s79
    %p88 = scmp.eq.s32.totalorder %s26, 0
    %p89 = por %p87, %p88
    %p90 = scmp.ne.s32.totalorder %s78, %s79
    %p91 = scmp.eq.s32.totalorder %s27, 1
    %p92 = por %p90, %p91
    %p94 = scmp.ne.s32.totalorder %s79, %s93
    %p95 = scmp.eq.s32.totalorder %s27, 0
    %p96 = por %p94, %p95
    %s98 = sadd.s32 %s97, 1
    %p101 = scmp.eq.s32.totalorder %s21, 1
    %p102 = scmp.ne.s32.totalorder %s97, %s99
    %p103 = scmp.eq.s32.totalorder %s21, 0
    %p104 = por %p102, %p103
    %p105 = scmp.ne.s32.totalorder %s97, %s99
    %p106 = scmp.eq.s32.totalorder %s26, 1
    %p107 = por %p105, %p106
    %p108 = scmp.ne.s32.totalorder %s99, %s100
    %p109 = scmp.eq.s32.totalorder %s26, 0
    %p110 = por %p108, %p109
    %p111 = scmp.ne.s32.totalorder %s99, %s100
    %p112 = scmp.eq.s32.totalorder %s27, 1
    %p113 = por %p111, %p112
    %p115 = scmp.ne.s32.totalorder %s100, %s114
    %p116 = scmp.eq.s32.totalorder %s27, 0
    %p117 = por %p115, %p116
    %s119 = sadd.s32 %s118, 1
    %p122 = scmp.eq.s32.totalorder %s21, 1
    %p123 = scmp.ne.s32.totalorder %s118, %s120
    %p124 = scmp.eq.s32.totalorder %s21, 0
    %p125 = por %p123, %p124
    %p126 = scmp.ne.s32.totalorder %s118, %s120
    %p127 = scmp.eq.s32.totalorder %s26, 1
    %p128 = por %p126, %p127
    %p129 = scmp.ne.s32.totalorder %s120, %s121
    %p130 = scmp.eq.s32.totalorder %s26, 0
    %p131 = por %p129, %p130
    %p132 = scmp.ne.s32.totalorder %s120, %s121
    %p133 = scmp.eq.s32.totalorder %s27, 1
    %p134 = por %p132, %p133
    %p136 = scmp.ne.s32.totalorder %s121, %s135
    %p137 = scmp.eq.s32.totalorder %s27, 0
    %p138 = por %p136, %p137
    %s140 = sadd.s32 %s139, 1
    %p143 = scmp.eq.s32.totalorder %s21, 1
    %p144 = scmp.ne.s32.totalorder %s139, %s141
    %p145 = scmp.eq.s32.totalorder %s21, 0
    %p146 = por %p144, %p145
    %p147 = scmp.ne.s32.totalorder %s139, %s141
    %p148 = scmp.eq.s32.totalorder %s26, 1
    %p149 = por %p147, %p148
    %p150 = scmp.ne.s32.totalorder %s141, %s142
    %p151 = scmp.eq.s32.totalorder %s26, 0
    %p152 = por %p150, %p151
    %p153 = scmp.ne.s32.totalorder %s141, %s142
    %p154 = scmp.eq.s32.totalorder %s27, 1
    %p155 = por %p153, %p154
    %p157 = scmp.ne.s32.totalorder %s142, %s156
    %p158 = scmp.eq.s32.totalorder %s27, 0
    %p159 = por %p157, %p158
    %s160 = ssub.s32 %s21, %s28
    %p161 = scmp.eq.s32.totalorder %s160, 0
    %s163 = sadd.s32 %s162, 1
    %s164 = scalar_select %p161, %s162, %s163
    %p167 = pneg %p161
    %p168 = scmp.eq.s32.totalorder %s21, 1
    %p169 = por %p167, %p168
    %p170 = scmp.ne.s32.totalorder %s162, %s165
    %p171 = scmp.eq.s32.totalorder %s21, 0
    %p172 = por %p170, %p171
    %p173 = scmp.ne.s32.totalorder %s162, %s165
    %p174 = scmp.eq.s32.totalorder %s26, 1
    %p175 = por %p173, %p174
    %p176 = scmp.ne.s32.totalorder %s165, %s166
    %p177 = scmp.eq.s32.totalorder %s26, 0
    %p178 = por %p176, %p177
    %p179 = scmp.ne.s32.totalorder %s165, %s166
    %p180 = scmp.eq.s32.totalorder %s27, 1
    %p181 = por %p179, %p180
    %p183 = scmp.ne.s32.totalorder %s166, %s182
    %p184 = scmp.eq.s32.totalorder %s27, 0
    %p185 = por %p183, %p184
    %s186 = ssub.s32 %s21, %s28
    %p187 = scmp.eq.s32.totalorder %s186, 0
    %s189 = sadd.s32 %s188, 1
    %s190 = scalar_select %p187, %s188, %s189
    %p193 = pneg %p187
    %p194 = scmp.eq.s32.totalorder %s21, 1
    %p195 = por %p193, %p194
    %p196 = scmp.ne.s32.totalorder %s188, %s191
    %p197 = scmp.eq.s32.totalorder %s21, 0
    %p198 = por %p196, %p197
    %p199 = scmp.ne.s32.totalorder %s188, %s191
    %p200 = scmp.eq.s32.totalorder %s26, 1
    %p201 = por %p199, %p200
    %p202 = scmp.ne.s32.totalorder %s191, %s192
    %p203 = scmp.eq.s32.totalorder %s26, 0
    %p204 = por %p202, %p203
    %p205 = scmp.ne.s32.totalorder %s191, %s192
    %p206 = scmp.eq.s32.totalorder %s27, 1
    %p207 = por %p205, %p206
    %p209 = scmp.ne.s32.totalorder %s192, %s208
    %p210 = scmp.eq.s32.totalorder %s27, 0
    %p211 = por %p209, %p210
    %p212 = scmp.le.s32.totalorder 1, %s21
    %p213 = scmp.lt.s32.totalorder %s21, 3
    %p214 = pnand %p212, %p213
    %p215 = pneg %p214
    // Predicated region
    $region9: #{conv_block_forward.2} parent=5 // pred_check
      _
    $region10: #{conv_block_forward.2} parent=5 // pred_check_branch
      %217 = sbr.rel (%p214) target = $region12
    $region11: #{conv_block_forward.2} parent=5 // pred_region
      %s218 = ssub.s32 %s21, 1
      // Predicated region
      $region13: #{conv_block_forward.2} parent=11 // pred_check
        %p219 = pneg %p68
      $region14: #{conv_block_forward.2} parent=11 // pred_check_branch
        %221 = sbr.rel (%p219) target = $region16
      $region15: #{conv_block_forward.2} parent=11 // pred_region
        _
      $region16: #{conv_block_forward.2} parent=11 // pred_fallthru
        _
      // Predicated region
      $region17: #{conv_block_forward.2} parent=11 // pred_check
        %p222 = pneg %p89
      $region18: #{conv_block_forward.2} parent=11 // pred_check_branch
        %224 = sbr.rel (%p222) target = $region20
      $region19: #{conv_block_forward.2} parent=11 // pred_region
        _
      $region20: #{conv_block_forward.2} parent=11 // pred_fallthru
        _
      // Predicated region
      $region21: #{conv_block_forward.2} parent=11 // pred_check
        %p225 = pneg %p110
      $region22: #{conv_block_forward.2} parent=11 // pred_check_branch
        %227 = sbr.rel (%p225) target = $region24
      $region23: #{conv_block_forward.2} parent=11 // pred_region
        _
      $region24: #{conv_block_forward.2} parent=11 // pred_fallthru
        _
      // Predicated region
      $region25: #{conv_block_forward.2} parent=11 // pred_check
        %p228 = pneg %p131
      $region26: #{conv_block_forward.2} parent=11 // pred_check_branch
        %230 = sbr.rel (%p228) target = $region28
      $region27: #{conv_block_forward.2} parent=11 // pred_region
        _
      $region28: #{conv_block_forward.2} parent=11 // pred_fallthru
        _
      // Predicated region
      $region29: #{conv_block_forward.2} parent=11 // pred_check
        %p231 = pneg %p152
      $region30: #{conv_block_forward.2} parent=11 // pred_check_branch
        %233 = sbr.rel (%p231) target = $region32
      $region31: #{conv_block_forward.2} parent=11 // pred_region
        _
      $region32: #{conv_block_forward.2} parent=11 // pred_fallthru
        _
    $region12: #{conv_block_forward.2} parent=5 // pred_fallthru
      _
    %p234 = scmp.lt.s32.totalorder %s21, 2
    // Predicated region
    $region33: #{conv_block_forward.2} parent=5 // pred_check
      %p235 = pneg %p234
    $region34: #{conv_block_forward.2} parent=5 // pred_check_branch
      %237 = sbr.rel (%p235) target = $region36
    $region35: #{conv_block_forward.2} parent=5 // pred_region
      // Predicated region
      $region37: #{conv_block_forward.2} parent=35 // pred_check
        %p238 = pneg %p41
      $region38: #{conv_block_forward.2} parent=35 // pred_check_branch
        %240 = sbr.rel (%p238) target = $region40
      $region39: #{conv_block_forward.2} parent=35 // pred_region
        %p241 = scmp.lt.s32.totalorder %s21, 1
        %s242 = scalar_select %p241, %s21, 1
        %s243 = smul.addr %s242, 4
        %s244 = smul.addr %s243, 8
        %s245 = scalar_lea.vmem %s1, %s244
      $region40: #{conv_block_forward.2} parent=35 // pred_fallthru
        _
    $region36: #{conv_block_forward.2} parent=5 // pred_fallthru
      _
    %p246 = scmp.le.s32.totalorder 1, %s21
    %p247 = scmp.lt.s32.totalorder %s21, 3
    %p248 = pnand %p246, %p247
    %p249 = pneg %p248
    // Predicated region
    $region41: #{conv_block_forward.2} parent=5 // pred_check
      _
    $region42: #{conv_block_forward.2} parent=5 // pred_check_branch
      %251 = sbr.rel (%p248) target = $region44
    $region43: #{conv_block_forward.2} parent=5 // pred_region
      %s252 = ssub.s32 %s21, 1
      %p253 = scmp.lt.s32.totalorder %s26, 1
      %s254 = scalar_select %p253, %s26, 1
      %s255 = smul.addr %s254, 4
      %s256 = smul.addr %s255, 8
      %s257 = scalar_lea.vmem %s1, %s256
      %p258 = pneg %p47
      %p259 = pneg %p44
      %p260 = pneg %p68
      %p261 = pneg %p65
      %p262 = pneg %p89
      %p263 = pneg %p86
      %p264 = pneg %p110
      %p265 = pneg %p107
      %p266 = pneg %p131
      %p267 = pneg %p128
      %p268 = pneg %p152
      %p269 = pneg %p149
      %p270 = pneg %p178
      %p271 = pneg %p175
      %p272 = scmp.lt.s32.totalorder %s26, 1
      %s273 = scalar_select %p272, %s26, 1
      %s274 = smul.addr %s273, 4
      %s275 = smul.addr %s274, 4
      %s276 = scalar_lea.vmem %s7, %s275
      %p277 = pneg %p204
      %p278 = pneg %p201
      %p279 = scmp.lt.s32.totalorder %s26, 1
      %s280 = scalar_select %p279, %s26, 1
      %s281 = smul.addr %s280, 2
      %s282 = smul.addr %s281, 2
      %s283 = scalar_lea.vmem %s8, %s282
      %p284 = scmp.lt.s32.totalorder %s26, 1
      %s285 = scalar_select %p284, %s26, 1
      %s286 = smul.addr %s285, 4
      %s287 = smul.addr %s286, 8
      %s288 = scalar_lea.vmem %s1, %s287
      %p289 = scmp.lt.s32.totalorder %s26, 1
      %s290 = scalar_select %p289, %s26, 1
      %s291 = smul.addr %s290, 4
      %s292 = smul.addr %s291, 4
      %s293 = scalar_lea.vmem %s7, %s292
      %p294 = scmp.lt.s32.totalorder %s26, 1
      %s295 = scalar_select %p294, %s26, 1
      %s296 = smul.addr %s295, 2
      %s297 = smul.addr %s296, 2
      %s298 = scalar_lea.vmem %s8, %s297
      %s299 = sld [smem:[#allocation3 + %s26]]
      %v300 = vlaneseq
      %v301 = vshrl.u32 %v300, 7
      %v302 = vadd.s32 %v301, 8
      %v303 = vstv %s299
      %vm304 = vcmp.lt.s32.totalorder %v301, %v303
      %vm305 = vcmp.lt.s32.totalorder %v302, %v303
      %v306 = vsel %vm304, 1, 0
      %v307 = vsel %vm305, 1, 0
      %v308 = vcvt.s32.f32 %v306
      %v309 = vcvt.s32.f32 %v307
      %v310 = vld [vmem:[%s288] sm:$0xff]
      %v311 = vld [vmem:[%s288 + $0x8] sm:$0xff]
      %v312 = vld [vmem:[%s288 + $0x10] sm:$0xff]
      %v313 = vld [vmem:[%s288 + $0x18] sm:$0xff]
      %v314 = vadd.f32 %v310, %v311
      %315 = vadd.xlane.f32.xlu0 %v314
      %v316 = vpop.xlane.xlu0 %315
      %v317 = vadd.f32 %v312, %v313
      %318 = vadd.xlane.f32.xlu0 %v317
      %v319 = vpop.xlane.xlu0 %318
      %v320 = vrcp.pop 256.0
      %v321 = vmul.f32 %v316, %v320
      %v322 = vmul.f32 %v319, %v320
      %v323 = vsub.f32 %v310, %v321
      %v324 = vsub.f32 %v311, %v321
      %v325 = vsub.f32 %v312, %v322
      %v326 = vsub.f32 %v313, %v322
      %v327 = vmul.f32 %v323, %v323
      %v328 = vmul.f32 %v324, %v324
      %v329 = vmul.f32 %v325, %v325
      %v330 = vmul.f32 %v326, %v326
      %v331 = vadd.f32 %v327, %v328
      %332 = vadd.xlane.f32.xlu0 %v331
      %v333 = vpop.xlane.xlu0 %332
      %v334 = vadd.f32 %v329, %v330
      %335 = vadd.xlane.f32.xlu0 %v334
      %v336 = vpop.xlane.xlu0 %335
      %v337 = vmul.f32 %v333, %v320
      %v338 = vmul.f32 %v336, %v320
      %v339 = vadd.f32 %v337, 1e-06
      %v340 = vadd.f32 %v338, 1e-06
      %v341 = vrsqrt.pop %v339
      %v342 = vrsqrt.pop %v340
      %v343 = vmul.f32 %v323, %v341
      %v344 = vmul.f32 %v324, %v341
      %v345 = vmul.f32 %v325, %v342
      %v346 = vmul.f32 %v326, %v342
      %v347 = vld [vmem:[%s2] sm:$0x3]
      %v349 = vlaneseq
      %v350 = vshrl.u32 %v349, 7
      %v351 = vsub.s32 0, %v350
      %v352 = vrot.slane %v347, %v351
      %v353 = vlaneseq
      %v354 = vshrl.u32 %v353, 7
      %v355 = vsub.s32 1, %v354
      %v356 = vrot.slane %v347, %v355
      %v359 = vmul.f32 %v343, %v352
      %v360 = vmul.f32 %v344, %v356
      %v361 = vmul.f32 %v345, %v352
      %v362 = vmul.f32 %v346, %v356
      %v363 = vld [vmem:[%s3] sm:$0x3]
      %v365 = vlaneseq
      %v366 = vshrl.u32 %v365, 7
      %v367 = vsub.s32 0, %v366
      %v368 = vrot.slane %v363, %v367
      %v369 = vlaneseq
      %v370 = vshrl.u32 %v369, 7
      %v371 = vsub.s32 1, %v370
      %v372 = vrot.slane %v363, %v371
      %v375 = vadd.f32 %v359, %v368
      %v376 = vadd.f32 %v360, %v372
      %v377 = vadd.f32 %v361, %v368
      %v378 = vadd.f32 %v362, %v372
      %v379 = vpack.c.bf16 %v377, %v375
      %v380 = vpack.c.bf16 %v378, %v376
      %v381 = vld [vmem:[%s4] sm:$0xff]
      %v382 = vld [vmem:[%s4 + $0x8] sm:$0xff]
      %v383 = vld [vmem:[%s4 + $0x10] sm:$0xff]
      %v384 = vld [vmem:[%s4 + $0x18] sm:$0xff]
      %v385 = vld [vmem:[%s4 + $0x20] sm:$0xff]
      %v386 = vld [vmem:[%s4 + $0x28] sm:$0xff]
      %v387 = vld [vmem:[%s4 + $0x30] sm:$0xff]
      %v388 = vld [vmem:[%s4 + $0x38] sm:$0xff]
      %v389 = vld [vmem:[%s4 + $0x40] sm:$0xff]
      %v390 = vld [vmem:[%s4 + $0x48] sm:$0xff]
      %v391 = vld [vmem:[%s4 + $0x50] sm:$0xff]
      %v392 = vld [vmem:[%s4 + $0x58] sm:$0xff]
      %v393 = vld [vmem:[%s4 + $0x60] sm:$0xff]
      %v394 = vld [vmem:[%s4 + $0x68] sm:$0xff]
      %v395 = vld [vmem:[%s4 + $0x70] sm:$0xff]
      %v396 = vld [vmem:[%s4 + $0x78] sm:$0xff]
      %v397 = vld [vmem:[%s4 + $0x80] sm:$0xff]
      %v398 = vld [vmem:[%s4 + $0x88] sm:$0xff]
      %v399 = vld [vmem:[%s4 + $0x90] sm:$0xff]
      %v400 = vld [vmem:[%s4 + $0x98] sm:$0xff]
      %v401 = vld [vmem:[%s4 + $0xa0] sm:$0xff]
      %v402 = vld [vmem:[%s4 + $0xa8] sm:$0xff]
      %v403 = vld [vmem:[%s4 + $0xb0] sm:$0xff]
      %v404 = vld [vmem:[%s4 + $0xb8] sm:$0xff]
      %v405 = vld [vmem:[%s4 + $0xc0] sm:$0xff]
      %v406 = vld [vmem:[%s4 + $0xc8] sm:$0xff]
      %v407 = vld [vmem:[%s4 + $0xd0] sm:$0xff]
      %v408 = vld [vmem:[%s4 + $0xd8] sm:$0xff]
      %v409 = vld [vmem:[%s4 + $0xe0] sm:$0xff]
      %v410 = vld [vmem:[%s4 + $0xe8] sm:$0xff]
      %v411 = vld [vmem:[%s4 + $0xf0] sm:$0xff]
      %v412 = vld [vmem:[%s4 + $0xf8] sm:$0xff]
      %v413 = vld [vmem:[%s4 + $0x100] sm:$0xff]
      %v414 = vld [vmem:[%s4 + $0x108] sm:$0xff]
      %v415 = vld [vmem:[%s4 + $0x110] sm:$0xff]
      %v416 = vld [vmem:[%s4 + $0x118] sm:$0xff]
      %v417 = vld [vmem:[%s4 + $0x120] sm:$0xff]
      %v418 = vld [vmem:[%s4 + $0x128] sm:$0xff]
      %v419 = vld [vmem:[%s4 + $0x130] sm:$0xff]
      %v420 = vld [vmem:[%s4 + $0x138] sm:$0xff]
      %v421 = vld [vmem:[%s4 + $0x140] sm:$0xff]
      %v422 = vld [vmem:[%s4 + $0x148] sm:$0xff]
      %v423 = vld [vmem:[%s4 + $0x150] sm:$0xff]
      %v424 = vld [vmem:[%s4 + $0x158] sm:$0xff]
      %v425 = vld [vmem:[%s4 + $0x160] sm:$0xff]
      %v426 = vld [vmem:[%s4 + $0x168] sm:$0xff]
      %v427 = vld [vmem:[%s4 + $0x170] sm:$0xff]
      %v428 = vld [vmem:[%s4 + $0x178] sm:$0xff]
      %v429 = vld [vmem:[%s4 + $0x180] sm:$0xff]
      %v430 = vld [vmem:[%s4 + $0x188] sm:$0xff]
      %v431 = vld [vmem:[%s4 + $0x190] sm:$0xff]
      %v432 = vld [vmem:[%s4 + $0x198] sm:$0xff]
      %v433 = vld [vmem:[%s4 + $0x1a0] sm:$0xff]
      %v434 = vld [vmem:[%s4 + $0x1a8] sm:$0xff]
      %v435 = vld [vmem:[%s4 + $0x1b0] sm:$0xff]
      %v436 = vld [vmem:[%s4 + $0x1b8] sm:$0xff]
      %v437 = vld [vmem:[%s4 + $0x1c0] sm:$0xff]
      %v438 = vld [vmem:[%s4 + $0x1c8] sm:$0xff]
      %v439 = vld [vmem:[%s4 + $0x1d0] sm:$0xff]
      %v440 = vld [vmem:[%s4 + $0x1d8] sm:$0xff]
      %v441 = vld [vmem:[%s4 + $0x1e0] sm:$0xff]
      %v442 = vld [vmem:[%s4 + $0x1e8] sm:$0xff]
      %v443 = vld [vmem:[%s4 + $0x1f0] sm:$0xff]
      %v444 = vld [vmem:[%s4 + $0x1f8] sm:$0xff]
      %v445 = vld [vmem:[%s5] sm:$0xf]
      %v447 = vlaneseq
      %v448 = vshrl.u32 %v447, 7
      %v449 = vsub.s32 0, %v448
      %v450 = vrot.slane %v445, %v449
      %v451 = vlaneseq
      %v452 = vshrl.u32 %v451, 7
      %v453 = vsub.s32 1, %v452
      %v454 = vrot.slane %v445, %v453
      %v455 = vlaneseq
      %v456 = vshrl.u32 %v455, 7
      %v457 = vsub.s32 2, %v456
      %v458 = vrot.slane %v445, %v457
      %v459 = vlaneseq
      %v460 = vshrl.u32 %v459, 7
      %v461 = vsub.s32 3, %v460
      %v462 = vrot.slane %v445, %v461
      %v531 = vunpack.c.l.b16 %v381
      %v532 = vunpack.c.h.b16 %v381
      %v533 = vunpack.c.l.b16 %v382
      %v534 = vunpack.c.h.b16 %v382
      %v535 = vunpack.c.l.b16 %v383
      %v536 = vunpack.c.h.b16 %v383
      %v537 = vunpack.c.l.b16 %v384
      %v538 = vunpack.c.h.b16 %v384
      %v539 = vunpack.c.l.b16 %v385
      %v540 = vunpack.c.h.b16 %v385
      %v541 = vunpack.c.l.b16 %v386
      %v542 = vunpack.c.h.b16 %v386
      %v543 = vunpack.c.l.b16 %v387
      %v544 = vunpack.c.h.b16 %v387
      %v545 = vunpack.c.l.b16 %v388
      %v546 = vunpack.c.h.b16 %v388
      %v547 = vunpack.c.l.b16 %v389
      %v548 = vunpack.c.h.b16 %v389
      %v549 = vunpack.c.l.b16 %v390
      %v550 = vunpack.c.h.b16 %v390
      %v551 = vunpack.c.l.b16 %v391
      %v552 = vunpack.c.h.b16 %v391
      %v553 = vunpack.c.l.b16 %v392
      %v554 = vunpack.c.h.b16 %v392
      %v555 = vunpack.c.l.b16 %v393
      %v556 = vunpack.c.h.b16 %v393
      %v557 = vunpack.c.l.b16 %v394
      %v558 = vunpack.c.h.b16 %v394
      %v559 = vunpack.c.l.b16 %v395
      %v560 = vunpack.c.h.b16 %v395
      %v561 = vunpack.c.l.b16 %v396
      %v562 = vunpack.c.h.b16 %v396
      %v563 = vunpack.c.l.b16 %v397
      %v564 = vunpack.c.h.b16 %v397
      %v565 = vunpack.c.l.b16 %v398
      %v566 = vunpack.c.h.b16 %v398
      %v567 = vunpack.c.l.b16 %v399
      %v568 = vunpack.c.h.b16 %v399
      %v569 = vunpack.c.l.b16 %v400
      %v570 = vunpack.c.h.b16 %v400
      %v571 = vunpack.c.l.b16 %v401
      %v572 = vunpack.c.h.b16 %v401
      %v573 = vunpack.c.l.b16 %v402
      %v574 = vunpack.c.h.b16 %v402
      %v575 = vunpack.c.l.b16 %v403
      %v576 = vunpack.c.h.b16 %v403
      %v577 = vunpack.c.l.b16 %v404
      %v578 = vunpack.c.h.b16 %v404
      %v579 = vunpack.c.l.b16 %v405
      %v580 = vunpack.c.h.b16 %v405
      %v581 = vunpack.c.l.b16 %v406
      %v582 = vunpack.c.h.b16 %v406
      %v583 = vunpack.c.l.b16 %v407
      %v584 = vunpack.c.h.b16 %v407
      %v585 = vunpack.c.l.b16 %v408
      %v586 = vunpack.c.h.b16 %v408
      %v587 = vunpack.c.l.b16 %v409
      %v588 = vunpack.c.h.b16 %v409
      %v589 = vunpack.c.l.b16 %v410
      %v590 = vunpack.c.h.b16 %v410
      %v591 = vunpack.c.l.b16 %v411
      %v592 = vunpack.c.h.b16 %v411
      %v593 = vunpack.c.l.b16 %v412
      %v594 = vunpack.c.h.b16 %v412
      %v595 = vunpack.c.l.b16 %v413
      %v596 = vunpack.c.h.b16 %v413
      %v597 = vunpack.c.l.b16 %v414
      %v598 = vunpack.c.h.b16 %v414
      %v599 = vunpack.c.l.b16 %v415
      %v600 = vunpack.c.h.b16 %v415
      %v601 = vunpack.c.l.b16 %v416
      %v602 = vunpack.c.h.b16 %v416
      %v603 = vunpack.c.l.b16 %v417
      %v604 = vunpack.c.h.b16 %v417
      %v605 = vunpack.c.l.b16 %v418
      %v606 = vunpack.c.h.b16 %v418
      %v607 = vunpack.c.l.b16 %v419
      %v608 = vunpack.c.h.b16 %v419
      %v609 = vunpack.c.l.b16 %v420
      %v610 = vunpack.c.h.b16 %v420
      %v611 = vunpack.c.l.b16 %v421
      %v612 = vunpack.c.h.b16 %v421
      %v613 = vunpack.c.l.b16 %v422
      %v614 = vunpack.c.h.b16 %v422
      %v615 = vunpack.c.l.b16 %v423
      %v616 = vunpack.c.h.b16 %v423
      %v617 = vunpack.c.l.b16 %v424
      %v618 = vunpack.c.h.b16 %v424
      %v619 = vunpack.c.l.b16 %v425
      %v620 = vunpack.c.h.b16 %v425
      %v621 = vunpack.c.l.b16 %v426
      %v622 = vunpack.c.h.b16 %v426
      %v623 = vunpack.c.l.b16 %v427
      %v624 = vunpack.c.h.b16 %v427
      %v625 = vunpack.c.l.b16 %v428
      %v626 = vunpack.c.h.b16 %v428
      %v627 = vunpack.c.l.b16 %v429
      %v628 = vunpack.c.h.b16 %v429
      %v629 = vunpack.c.l.b16 %v430
      %v630 = vunpack.c.h.b16 %v430
      %v631 = vunpack.c.l.b16 %v431
      %v632 = vunpack.c.h.b16 %v431
      %v633 = vunpack.c.l.b16 %v432
      %v634 = vunpack.c.h.b16 %v432
      %v635 = vunpack.c.l.b16 %v433
      %v636 = vunpack.c.h.b16 %v433
      %v637 = vunpack.c.l.b16 %v434
      %v638 = vunpack.c.h.b16 %v434
      %v639 = vunpack.c.l.b16 %v435
      %v640 = vunpack.c.h.b16 %v435
      %v641 = vunpack.c.l.b16 %v436
      %v642 = vunpack.c.h.b16 %v436
      %v643 = vunpack.c.l.b16 %v437
      %v644 = vunpack.c.h.b16 %v437
      %v645 = vunpack.c.l.b16 %v438
      %v646 = vunpack.c.h.b16 %v438
      %v647 = vunpack.c.l.b16 %v439
      %v648 = vunpack.c.h.b16 %v439
      %v649 = vunpack.c.l.b16 %v440
      %v650 = vunpack.c.h.b16 %v440
      %v651 = vunpack.c.l.b16 %v441
      %v652 = vunpack.c.h.b16 %v441
      %v653 = vunpack.c.l.b16 %v442
      %v654 = vunpack.c.h.b16 %v442
      %v655 = vunpack.c.l.b16 %v443
      %v656 = vunpack.c.h.b16 %v443
      %v657 = vunpack.c.l.b16 %v444
      %v658 = vunpack.c.h.b16 %v444
      %v659 = vpack.c.b16 %v535, %v531
      %v660 = vpack.c.b16 %v536, %v532
      %v661 = vpack.c.b16 %v537, %v533
      %v662 = vpack.c.b16 %v538, %v534
      %v663 = vpack.c.b16 %v543, %v539
      %v664 = vpack.c.b16 %v544, %v540
      %v665 = vpack.c.b16 %v545, %v541
      %v666 = vpack.c.b16 %v546, %v542
      %v667 = vpack.c.b16 %v551, %v547
      %v668 = vpack.c.b16 %v552, %v548
      %v669 = vpack.c.b16 %v553, %v549
      %v670 = vpack.c.b16 %v554, %v550
      %v671 = vpack.c.b16 %v559, %v555
      %v672 = vpack.c.b16 %v560, %v556
      %v673 = vpack.c.b16 %v561, %v557
      %v674 = vpack.c.b16 %v562, %v558
      %v675 = vpack.c.b16 %v567, %v563
      %v676 = vpack.c.b16 %v568, %v564
      %v677 = vpack.c.b16 %v569, %v565
      %v678 = vpack.c.b16 %v570, %v566
      %v679 = vpack.c.b16 %v575, %v571
      %v680 = vpack.c.b16 %v576, %v572
      %v681 = vpack.c.b16 %v577, %v573
      %v682 = vpack.c.b16 %v578, %v574
      %v683 = vpack.c.b16 %v583, %v579
      %v684 = vpack.c.b16 %v584, %v580
      %v685 = vpack.c.b16 %v585, %v581
      %v686 = vpack.c.b16 %v586, %v582
      %v687 = vpack.c.b16 %v591, %v587
      %v688 = vpack.c.b16 %v592, %v588
      %v689 = vpack.c.b16 %v593, %v589
      %v690 = vpack.c.b16 %v594, %v590
      %v691 = vpack.c.b16 %v599, %v595
      %v692 = vpack.c.b16 %v600, %v596
      %v693 = vpack.c.b16 %v601, %v597
      %v694 = vpack.c.b16 %v602, %v598
      %v695 = vpack.c.b16 %v607, %v603
      %v696 = vpack.c.b16 %v608, %v604
      %v697 = vpack.c.b16 %v609, %v605
      %v698 = vpack.c.b16 %v610, %v606
      %v699 = vpack.c.b16 %v615, %v611
      %v700 = vpack.c.b16 %v616, %v612
      %v701 = vpack.c.b16 %v617, %v613
      %v702 = vpack.c.b16 %v618, %v614
      %v703 = vpack.c.b16 %v623, %v619
      %v704 = vpack.c.b16 %v624, %v620
      %v705 = vpack.c.b16 %v625, %v621
      %v706 = vpack.c.b16 %v626, %v622
      %v707 = vpack.c.b16 %v631, %v627
      %v708 = vpack.c.b16 %v632, %v628
      %v709 = vpack.c.b16 %v633, %v629
      %v710 = vpack.c.b16 %v634, %v630
      %v711 = vpack.c.b16 %v639, %v635
      %v712 = vpack.c.b16 %v640, %v636
      %v713 = vpack.c.b16 %v641, %v637
      %v714 = vpack.c.b16 %v642, %v638
      %v715 = vpack.c.b16 %v647, %v643
      %v716 = vpack.c.b16 %v648, %v644
      %v717 = vpack.c.b16 %v649, %v645
      %v718 = vpack.c.b16 %v650, %v646
      %v719 = vpack.c.b16 %v655, %v651
      %v720 = vpack.c.b16 %v656, %v652
      %v721 = vpack.c.b16 %v657, %v653
      %v722 = vpack.c.b16 %v658, %v654
      %787 = vmatprep.subr.bf16.mxu0 %v660
      %788 = vmatpush1.bf16.msra.mxu0 %v659
      %789 = vmatprep.subr.bf16.mxu0 %v664
      %790 = vmatpush1.bf16.msra.mxu0 %v663
      %791 = vmatprep.subr.bf16.mxu0 %v668
      %792 = vmatpush1.bf16.msra.mxu0 %v667
      %793 = vmatprep.subr.bf16.mxu0 %v672
      %794 = vmatpush1.bf16.msra.mxu0 %v671
      %795 = vmatprep.subr.bf16.mxu0 %v676
      %796 = vmatpush1.bf16.msra.mxu0 %v675
      %797 = vmatprep.subr.bf16.mxu0 %v680
      %798 = vmatpush1.bf16.msra.mxu0 %v679
      %799 = vmatprep.subr.bf16.mxu0 %v684
      %800 = vmatpush1.bf16.msra.mxu0 %v683
      %801 = vmatprep.subr.bf16.mxu0 %v688
      %802 = vmatpush1.bf16.msra.mxu0 %v687
      %803 = vmatprep.subr.bf16.mxu0 %v692
      %804 = vmatpush1.bf16.msra.mxu0 %v691
      %805 = vmatprep.subr.bf16.mxu0 %v696
      %806 = vmatpush1.bf16.msra.mxu0 %v695
      %807 = vmatprep.subr.bf16.mxu0 %v700
      %808 = vmatpush1.bf16.msra.mxu0 %v699
      %809 = vmatprep.subr.bf16.mxu0 %v704
      %810 = vmatpush1.bf16.msra.mxu0 %v703
      %811 = vmatprep.subr.bf16.mxu0 %v708
      %812 = vmatpush1.bf16.msra.mxu0 %v707
      %813 = vmatprep.subr.bf16.mxu0 %v712
      %814 = vmatpush1.bf16.msra.mxu0 %v711
      %815 = vmatprep.subr.bf16.mxu0 %v716
      %816 = vmatpush1.bf16.msra.mxu0 %v715
      %817 = vmatprep.subr.bf16.mxu0 %v720
      %818 = vmatpush1.bf16.msra.mxu0 %v719
      %819 = vmatprep.mubr.bf16.mxu0 %v380
      %820 = vmatmul.mubr.bf16.gmra.mrb[0].mxu0 %v379
      %v821 = vpop.f32.mrb[0].mxu0
      %v822 = vadd.f32 %v450, %v821
      %v823 = vpop.f32.mrb[0].mxu0
      %v824 = vadd.f32 %v454, %v823
      %v825 = vpop.f32.mrb[0].mxu0
      %v826 = vadd.f32 %v450, %v825
      %v827 = vpop.f32.mrb[0].mxu0
      %v828 = vadd.f32 %v454, %v827
      %829 = vdwg.mxu0
      %830 = vmatprep.subr.bf16.mxu0 %v662
      %831 = vmatpush1.bf16.msra.mxu0 %v661
      %832 = vmatprep.subr.bf16.mxu0 %v666
      %833 = vmatpush1.bf16.msra.mxu0 %v665
      %834 = vmatprep.subr.bf16.mxu0 %v670
      %835 = vmatpush1.bf16.msra.mxu0 %v669
      %836 = vmatprep.subr.bf16.mxu0 %v674
      %837 = vmatpush1.bf16.msra.mxu0 %v673
      %838 = vmatprep.subr.bf16.mxu0 %v678
      %839 = vmatpush1.bf16.msra.mxu0 %v677
      %840 = vmatprep.subr.bf16.mxu0 %v682
      %841 = vmatpush1.bf16.msra.mxu0 %v681
      %842 = vmatprep.subr.bf16.mxu0 %v686
      %843 = vmatpush1.bf16.msra.mxu0 %v685
      %844 = vmatprep.subr.bf16.mxu0 %v690
      %845 = vmatpush1.bf16.msra.mxu0 %v689
      %846 = vmatprep.subr.bf16.mxu0 %v694
      %847 = vmatpush1.bf16.msra.mxu0 %v693
      %848 = vmatprep.subr.bf16.mxu0 %v698
      %849 = vmatpush1.bf16.msra.mxu0 %v697
      %850 = vmatprep.subr.bf16.mxu0 %v702
      %851 = vmatpush1.bf16.msra.mxu0 %v701
      %852 = vmatprep.subr.bf16.mxu0 %v706
      %853 = vmatpush1.bf16.msra.mxu0 %v705
      %854 = vmatprep.subr.bf16.mxu0 %v710
      %855 = vmatpush1.bf16.msra.mxu0 %v709
      %856 = vmatprep.subr.bf16.mxu0 %v714
      %857 = vmatpush1.bf16.msra.mxu0 %v713
      %858 = vmatprep.subr.bf16.mxu0 %v718
      %859 = vmatpush1.bf16.msra.mxu0 %v717
      %860 = vmatprep.subr.bf16.mxu0 %v722
      %861 = vmatpush1.bf16.msra.mxu0 %v721
      %862 = vmatprep.mubr.bf16.mxu0 %v380
      %863 = vmatmul.mubr.bf16.gmra.mrb[0].mxu0 %v379
      %v864 = vpop.f32.mrb[0].mxu0
      %v865 = vadd.f32 %v458, %v864
      %v866 = vpop.f32.mrb[0].mxu0
      %v867 = vadd.f32 %v462, %v866
      %v868 = vpop.f32.mrb[0].mxu0
      %v869 = vadd.f32 %v458, %v868
      %v870 = vpop.f32.mrb[0].mxu0
      %v871 = vadd.f32 %v462, %v870
      %872 = vdwg.mxu0
      %v873 = vxor.u32 %v865, 2147483648
      %v874 = vxor.u32 %v867, 2147483648
      %v875 = vxor.u32 %v869, 2147483648
      %v876 = vxor.u32 %v871, 2147483648
      %v877 = vmul.f32 %v873, 1.442695
      %v878 = vpow.pop %v877
      %v879 = vmul.f32 %v874, 1.442695
      %v880 = vpow.pop %v879
      %v881 = vmul.f32 %v875, 1.442695
      %v882 = vpow.pop %v881
      %v883 = vmul.f32 %v876, 1.442695
      %v884 = vpow.pop %v883
      %v885 = vadd.f32 %v878, 1.0
      %v886 = vadd.f32 %v880, 1.0
      %v887 = vadd.f32 %v882, 1.0
      %v888 = vadd.f32 %v884, 1.0
      %v889 = vrcp.pop %v885
      %v890 = vmul.f32 1.0, %v889
      %v891 = vrcp.pop %v886
      %v892 = vmul.f32 1.0, %v891
      %v893 = vrcp.pop %v887
      %v894 = vmul.f32 1.0, %v893
      %v895 = vrcp.pop %v888
      %v896 = vmul.f32 1.0, %v895
      %v897 = vmul.f32 %v822, %v890
      %v898 = vmul.f32 %v824, %v892
      %v899 = vmul.f32 %v826, %v894
      %v900 = vmul.f32 %v828, %v896
      %v901 = vmul.f32 %v897, %v308
      %v902 = vmul.f32 %v898, %v308
      %v903 = vmul.f32 %v899, %v309
      %v904 = vmul.f32 %v900, %v309
      %vm909 = vcmask 1041408
      %v910 = vrot.slane %v901, 6
      %v911 = vrot.slane %v902, 6
      %v912 = vrot.slane %v903, 6
      %v913 = vsel %vm909, %v910, %v912
      %v914 = vrot.slane %v904, 6
      %v915 = vsel %vm909, %v911, %v914
      %v922 = vsel %vm909, 0.0, %v910
      %v923 = vsel %vm909, 0.0, %v911
      %v924 = vsel %vm909, %v912, 0.0
      %v925 = vsel %vm909, %v914, 0.0
      %v926 = vld [vmem:[%s6] sm:$0x1f]
      %v927 = vld [vmem:[%s6 + $0x8] sm:$0x1f]
      %v928 = vlaneseq
      %v929 = vshrl.u32 %v928, 7
      %v930 = vsub.s32 0, %v929
      %v931 = vrot.slane %v926, %v930
      %v932 = vlaneseq
      %v933 = vshrl.u32 %v932, 7
      %v934 = vsub.s32 0, %v933
      %v935 = vrot.slane %v927, %v934
      %v936 = vmul.f32 %v931, %v922
      %v937 = vmul.f32 %v935, %v923
      %v938 = vmul.f32 %v931, %v913
      %v939 = vmul.f32 %v935, %v915
      %v940 = vlaneseq
      %v941 = vshrl.u32 %v940, 7
      %v942 = vsub.s32 1, %v941
      %v943 = vrot.slane %v926, %v942
      %v944 = vlaneseq
      %v945 = vshrl.u32 %v944, 7
      %v946 = vsub.s32 1, %v945
      %v947 = vrot.slane %v927, %v946
      %v948 = vmul.f32 %v943, %v922
      %v949 = vmul.f32 %v947, %v923
      %v950 = vmul.f32 %v943, %v913
      %v951 = vmul.f32 %v947, %v915
      %v952 = vmul.f32 %v943, %v924
      %v953 = vmul.f32 %v947, %v925
      %vm960 = vcmask 1046528
      %v961 = vrot.slane %v948, 1
      %v962 = vrot.slane %v950, 1
      %v963 = vsel %vm960, %v961, %v962
      %v964 = vrot.slane %v949, 1
      %v965 = vrot.slane %v951, 1
      %v966 = vsel %vm960, %v964, %v965
      %v967 = vrot.slane %v952, 1
      %v968 = vsel %vm960, %v962, %v967
      %v969 = vrot.slane %v953, 1
      %v970 = vsel %vm960, %v965, %v969
      %v975 = vadd.f32 %v936, %v963
      %v976 = vadd.f32 %v937, %v966
      %v977 = vadd.f32 %v938, %v968
      %v978 = vadd.f32 %v939, %v970
      %v979 = vlaneseq
      %v980 = vshrl.u32 %v979, 7
      %v981 = vsub.s32 2, %v980
      %v982 = vrot.slane %v926, %v981
      %v983 = vlaneseq
      %v984 = vshrl.u32 %v983, 7
      %v985 = vsub.s32 2, %v984
      %v986 = vrot.slane %v927, %v985
      %v987 = vmul.f32 %v982, %v922
      %v988 = vmul.f32 %v986, %v923
      %v989 = vmul.f32 %v982, %v913
      %v990 = vmul.f32 %v986, %v915
      %v991 = vmul.f32 %v982, %v924
      %v992 = vmul.f32 %v986, %v925
      %vm999 = vcmask 1045504
      %v1000 = vrot.slane %v987, 2
      %v1001 = vrot.slane %v989, 2
      %v1002 = vsel %vm999, %v1000, %v1001
      %v1003 = vrot.slane %v988, 2
      %v1004 = vrot.slane %v990, 2
      %v1005 = vsel %vm999, %v1003, %v1004
      %v1006 = vrot.slane %v991, 2
      %v1007 = vsel %vm999, %v1001, %v1006
      %v1008 = vrot.slane %v992, 2
      %v1009 = vsel %vm999, %v1004, %v1008
      %v1014 = vadd.f32 %v975, %v1002
      %v1015 = vadd.f32 %v976, %v1005
      %v1016 = vadd.f32 %v977, %v1007
      %v1017 = vadd.f32 %v978, %v1009
      %v1018 = vlaneseq
      %v1019 = vshrl.u32 %v1018, 7
      %v1020 = vsub.s32 3, %v1019
      %v1021 = vrot.slane %v926, %v1020
      %v1022 = vlaneseq
      %v1023 = vshrl.u32 %v1022, 7
      %v1024 = vsub.s32 3, %v1023
      %v1025 = vrot.slane %v927, %v1024
      %v1026 = vmul.f32 %v1021, %v922
      %v1027 = vmul.f32 %v1025, %v923
      %v1028 = vmul.f32 %v1021, %v913
      %v1029 = vmul.f32 %v1025, %v915
      %v1030 = vmul.f32 %v1021, %v924
      %v1031 = vmul.f32 %v1025, %v925
      %vm1038 = vcmask 1044480
      %v1039 = vrot.slane %v1026, 3
      %v1040 = vrot.slane %v1028, 3
      %v1041 = vsel %vm1038, %v1039, %v1040
      %v1042 = vrot.slane %v1027, 3
      %v1043 = vrot.slane %v1029, 3
      %v1044 = vsel %vm1038, %v1042, %v1043
      %v1045 = vrot.slane %v1030, 3
      %v1046 = vsel %vm1038, %v1040, %v1045
      %v1047 = vrot.slane %v1031, 3
      %v1048 = vsel %vm1038, %v1043, %v1047
      %v1053 = vadd.f32 %v1014, %v1041
      %v1054 = vadd.f32 %v1015, %v1044
      %v1055 = vadd.f32 %v1016, %v1046
      %v1056 = vadd.f32 %v1017, %v1048
      %v1057 = vlaneseq
      %v1058 = vshrl.u32 %v1057, 7
      %v1059 = vsub.s32 4, %v1058
      %v1060 = vrot.slane %v926, %v1059
      %v1061 = vlaneseq
      %v1062 = vshrl.u32 %v1061, 7
      %v1063 = vsub.s32 4, %v1062
      %v1064 = vrot.slane %v927, %v1063
      %v1065 = vmul.f32 %v1060, %v922
      %v1066 = vmul.f32 %v1064, %v923
      %v1067 = vmul.f32 %v1060, %v913
      %v1068 = vmul.f32 %v1064, %v915
      %v1069 = vmul.f32 %v1060, %v924
      %v1070 = vmul.f32 %v1064, %v925
      %vm1077 = vcmask 1043456
      %v1078 = vrot.slane %v1065, 4
      %v1079 = vrot.slane %v1067, 4
      %v1080 = vsel %vm1077, %v1078, %v1079
      %v1081 = vrot.slane %v1066, 4
      %v1082 = vrot.slane %v1068, 4
      %v1083 = vsel %vm1077, %v1081, %v1082
      %v1084 = vrot.slane %v1069, 4
      %v1085 = vsel %vm1077, %v1079, %v1084
      %v1086 = vrot.slane %v1070, 4
      %v1087 = vsel %vm1077, %v1082, %v1086
      %v1092 = vadd.f32 %v1053, %v1080
      %v1093 = vadd.f32 %v1054, %v1083
      %v1094 = vadd.f32 %v1055, %v1085
      %v1095 = vadd.f32 %v1056, %v1087
      %v1096 = vpack.c.bf16 %v1094, %v1092
      %v1097 = vpack.c.bf16 %v1095, %v1093
      %v1100 = vunpack.c.l.b16 %v1096
      %v1101 = vunpack.c.l.b16 %v1097
      %v1102 = vunpack.c.h.b16 %v1096
      %v1103 = vunpack.c.h.b16 %v1097
      %v1104 = vpack.c.b16 %v1101, %v1100
      %v1105 = vpack.c.b16 %v1103, %v1102
      %1108 = vst [vmem:[%s293] sm:$0xff] %v1104
      %1109 = vst [vmem:[%s293 + $0x8] sm:$0xff] %v1105
      %s1110 = scvt.s32.f32 %s299
      %s1111 = smax.f32 %s1110, 1.0
      %v1112 = vunpack.c.l.bf16 %v1096
      %v1113 = vunpack.c.l.bf16 %v1097
      %v1114 = vunpack.c.h.bf16 %v1096
      %v1115 = vunpack.c.h.bf16 %v1097
      %v1116 = vmul.f32 %v1112, %v308
      %v1117 = vmul.f32 %v1113, %v308
      %v1118 = vmul.f32 %v1114, %v309
      %v1119 = vmul.f32 %v1115, %v309
      %v1120 = vadd.f32 %v1116, %v1118
      %v1121 = vrot.slane %v1120, 4
      %v1122 = vadd.f32 %v1120, %v1121
      %v1123 = vrot.slane %v1122, 2
      %v1124 = vadd.f32 %v1122, %v1123
      %v1125 = vrot.slane %v1124, 1
      %v1126 = vadd.f32 %v1124, %v1125
      %v1127 = vadd.f32 %v1117, %v1119
      %v1128 = vrot.slane %v1127, 4
      %v1129 = vadd.f32 %v1127, %v1128
      %v1130 = vrot.slane %v1129, 2
      %v1131 = vadd.f32 %v1129, %v1130
      %v1132 = vrot.slane %v1131, 1
      %v1133 = vadd.f32 %v1131, %v1132
      %v1134 = vstv %s1111
      %v1135 = vrcp.pop %v1134
      %v1136 = vmul.f32 %v1126, %v1135
      %v1137 = vmul.f32 %v1133, %v1135
      %v1138 = vsub.f32 %v1112, %v1136
      %v1139 = vsub.f32 %v1113, %v1137
      %v1140 = vsub.f32 %v1114, %v1136
      %v1141 = vsub.f32 %v1115, %v1137
      %v1142 = vmul.f32 %v1138, %v308
      %v1143 = vmul.f32 %v1139, %v308
      %v1144 = vmul.f32 %v1140, %v309
      %v1145 = vmul.f32 %v1141, %v309
      %v1146 = vmul.f32 %v1142, %v1142
      %v1147 = vmul.f32 %v1143, %v1143
      %v1148 = vmul.f32 %v1144, %v1144
      %v1149 = vmul.f32 %v1145, %v1145
      %v1150 = vadd.f32 %v1146, %v1148
      %v1151 = vrot.slane %v1150, 4
      %v1152 = vadd.f32 %v1150, %v1151
      %v1153 = vrot.slane %v1152, 2
      %v1154 = vadd.f32 %v1152, %v1153
      %v1155 = vrot.slane %v1154, 1
      %v1156 = vadd.f32 %v1154, %v1155
      %v1157 = vadd.f32 %v1147, %v1149
      %v1158 = vrot.slane %v1157, 4
      %v1159 = vadd.f32 %v1157, %v1158
      %v1160 = vrot.slane %v1159, 2
      %v1161 = vadd.f32 %v1159, %v1160
      %v1162 = vrot.slane %v1161, 1
      %v1163 = vadd.f32 %v1161, %v1162
      %vm1164 = vcmask 1040384
      %v1165 = vsel %vm1164, %v1126, %v1156
      %v1166 = vsel %vm1164, %v1133, %v1163
      %v1169 = vcombine.low %v1165, %v1166
      %v1171 = vunpack.c.l.s4 1983009808
      %v1172 = vunpack.c.0.s8 %v1171
      %v1173 = vlaneseq
      %v1174 = vshrl.u32 %v1173, 7
      %v1175 = vsub.s32 %v1172, %v1174
      %v1176 = vrot.slane %v1169, %v1175
      %1178 = vst [vmem:[%s298] sm:$0xf] %v1176
      %p1179 = scmp.lt.s32.totalorder %s26, 1
      %s1180 = scalar_select %p1179, %s26, 1
      %s1181 = smul.addr %s1180, 4
      %s1182 = smul.addr %s1181, 4
      %s1183 = scalar_lea.vmem %s7, %s1182
      %p1184 = scmp.lt.s32.totalorder %s26, 1
      %s1185 = scalar_select %p1184, %s26, 1
      %s1186 = smul.addr %s1185, 2
      %s1187 = smul.addr %s1186, 2
      %s1188 = scalar_lea.vmem %s8, %s1187
      // Predicated region
      $region45: #{conv_block_forward.2} parent=43 // pred_check
        %p1189 = pneg %p175
      $region46: #{conv_block_forward.2} parent=43 // pred_check_branch
        %1191 = sbr.rel (%p1189) target = $region48
      $region47: #{conv_block_forward.2} parent=43 // pred_region
        _
      $region48: #{conv_block_forward.2} parent=43 // pred_fallthru
        _
      // Predicated region
      $region49: #{conv_block_forward.2} parent=43 // pred_check
        %p1192 = pneg %p201
      $region50: #{conv_block_forward.2} parent=43 // pred_check_branch
        %1194 = sbr.rel (%p1192) target = $region52
      $region51: #{conv_block_forward.2} parent=43 // pred_region
        _
      $region52: #{conv_block_forward.2} parent=43 // pred_fallthru
        _
    $region44: #{conv_block_forward.2} parent=5 // pred_fallthru
      _
    %p1195 = scmp.le.s32.totalorder 2, %s21
    // Predicated region
    $region53: #{conv_block_forward.2} parent=5 // pred_check
      %p1196 = pneg %p1195
    $region54: #{conv_block_forward.2} parent=5 // pred_check_branch
      %1198 = sbr.rel (%p1196) target = $region56
    $region55: #{conv_block_forward.2} parent=5 // pred_region
      %s1199 = ssub.s32 %s21, 2
      // Predicated region
      $region57: #{conv_block_forward.2} parent=55 // pred_check
        %p1200 = pneg %p181
      $region58: #{conv_block_forward.2} parent=55 // pred_check_branch
        %1202 = sbr.rel (%p1200) target = $region60
      $region59: #{conv_block_forward.2} parent=55 // pred_region
        %p1203 = scmp.lt.s32.totalorder %s27, 1
        %s1204 = scalar_select %p1203, %s27, 1
        %s1205 = smul.addr %s1204, 4
        %s1206 = smul.addr %s1205, 4
        %s1207 = scalar_lea.vmem %s7, %s1206
      $region60: #{conv_block_forward.2} parent=55 // pred_fallthru
        _
      // Predicated region
      $region61: #{conv_block_forward.2} parent=55 // pred_check
        %p1208 = pneg %p207
      $region62: #{conv_block_forward.2} parent=55 // pred_check_branch
        %1210 = sbr.rel (%p1208) target = $region64
      $region63: #{conv_block_forward.2} parent=55 // pred_region
        %p1211 = scmp.lt.s32.totalorder %s27, 1
        %s1212 = scalar_select %p1211, %s27, 1
        %s1213 = smul.addr %s1212, 2
        %s1214 = smul.addr %s1213, 2
        %s1215 = scalar_lea.vmem %s8, %s1214
      $region64: #{conv_block_forward.2} parent=55 // pred_fallthru
        _
    $region56: #{conv_block_forward.2} parent=5 // pred_fallthru
      _
  $region6: #{conv_block_forward.2} parent=0 // loop_footer
    %s25 = sadd.s32 1, %s21
  $region7: #{conv_block_forward.2} parent=0 // loop_footer_branch
    %20 = sbr.rel target = $region3
  $region8: #{conv_block_forward.2} parent=0 // loop_exit
    _

</llo_original>
